<compile_context>
chip_gen: v5e
topology: v5e:2x2
jax: 0.10.0
libtpu: 0.0.40
codegen_flags: <defaults>
</compile_context>

<pallas_src>
import functools

import jax
import jax.numpy as jnp
from jax import lax
from jax.experimental import pallas as pl
from jax.experimental.pallas import tpu as pltpu


# ----------------------------------------------------------------------------
# Pallas kernel
# ----------------------------------------------------------------------------
def _lstm_model_kernel(n_layers, hidden_size, eps,
                       src_ref, w_emb_ref, b_emb_ref, *rest):
    """Kernel arg order (after the 3 leading refs):
         [w_ih_0, w_hh_0, b_0, ..., w_ih_{L-1}, w_hh_{L-1}, b_{L-1},
          gamma, beta, w_fc, b_fc, out_ref, gates_buf, seq_buf]
    """
    lstm_refs = rest[:3 * n_layers]
    (gamma_ref, beta_ref, w_fc_ref, b_fc_ref,
     out_ref, gates_buf, seq_buf) = rest[3 * n_layers:]

    H = hidden_size
    S, B, V_in = src_ref.shape

    # Token embedding for ALL timesteps as a single MXU matmul (hoisted out of
    # the recurrence): (S*B, V) @ (V, I) + b.
    x2d = (jnp.dot(src_ref[...].reshape(S * B, V_in), w_emb_ref[...],
                   preferred_element_type=jnp.float32)
           + b_emb_ref[...])

    gamma = gamma_ref[...]
    beta = beta_ref[...]

    ln_sum = jnp.zeros((B, H), jnp.float32)

    # -------- stacked LSTM (PyTorch gate order i, f, g, o) ------------------
    def make_step(w_hh, is_last):
        def step(t, carry):
            if is_last:
                h_prev, c_prev, acc = carry
            else:
                h_prev, c_prev = carry
            # Only the hidden->hidden matmul stays inside the serial loop.
            gates = gates_buf[t] + jnp.dot(h_prev, w_hh,
                                           preferred_element_type=jnp.float32)
            i_g = jax.nn.sigmoid(gates[:, 0:H])
            f_g = jax.nn.sigmoid(gates[:, H:2 * H])
            g_g = jnp.tanh(gates[:, 2 * H:3 * H])
            o_g = jax.nn.sigmoid(gates[:, 3 * H:4 * H])
            c = f_g * c_prev + i_g * g_g
            h = o_g * jnp.tanh(c)
            if is_last:
                # LayerNorm fused into the last layer; accumulate sum_t LN(h_t).
                mean = jnp.mean(h, axis=-1, keepdims=True)
                var = jnp.mean(jnp.square(h - mean), axis=-1, keepdims=True)
                hn = (h - mean) * lax.rsqrt(var + eps) * gamma + beta
                return h, c, acc + hn
            seq_buf[t] = h          # only intermediate layers feed the next layer
            return h, c
        return step

    for layer in range(n_layers):
        w_ih = lstm_refs[3 * layer][...]
        w_hh = lstm_refs[3 * layer + 1][...]
        b = lstm_refs[3 * layer + 2][...]
        is_last = layer == n_layers - 1

        if layer > 0:
            x2d = seq_buf[...].reshape(S * B, H)

        # Input->hidden projection for all timesteps at once (one big matmul).
        gates_buf[...] = (jnp.dot(x2d, w_ih, preferred_element_type=jnp.float32)
                          + b).reshape(S, B, 4 * H)

        zeros = jnp.zeros((B, H), jnp.float32)
        init = (zeros, zeros, ln_sum) if is_last else (zeros, zeros)
        carry = lax.fori_loop(0, S, make_step(w_hh, is_last), init, unroll=True)
        if is_last:
            ln_sum = carry[2]

    # mean over time commutes with the linear fc head: one (B,H)@(H,V) matmul.
    out_ref[...] = (jnp.dot(ln_sum * (1.0 / S), w_fc_ref[...],
                            preferred_element_type=jnp.float32)
                    + b_fc_ref[...]).astype(out_ref.dtype)


# ----------------------------------------------------------------------------
# Wrapper
# ----------------------------------------------------------------------------
def lstm_model_forward(src, params, n_layers, hidden_size):
    """src: (B, S, V) float32 -> (B, V) float32."""
    B, S, V = src.shape
    # Pad batch up to the f32 sublane count (8) so the per-step (B, feat)
    # vregs / MXU rows are not mostly wasted.  Rows are independent, so the
    # padded rows are sliced off afterwards.
    B_pad = ((max(B, 8) + 7) // 8) * 8
    if B_pad != B:
        src = jnp.pad(src, ((0, B_pad - B), (0, 0), (0, 0)))
    src_t = jnp.transpose(src, (1, 0, 2))            # (S, B_pad, V)

    flat_inputs = [src_t, params["w_emb"], params["b_emb"]]
    for (w_ih, w_hh, b) in params["lstm"]:
        flat_inputs += [w_ih, w_hh, b]
    flat_inputs += [params["gamma"], params["beta"], params["w_fc"], params["b_fc"]]

    kernel = functools.partial(_lstm_model_kernel, n_layers, hidden_size, 1e-5)

    out = pl.pallas_call(
        kernel,
        out_shape=jax.ShapeDtypeStruct((B_pad, V), jnp.float32),
        in_specs=[pl.BlockSpec(memory_space=pltpu.MemorySpace.VMEM)] * len(flat_inputs),
        out_specs=pl.BlockSpec(memory_space=pltpu.MemorySpace.VMEM),
        scratch_shapes=[
            pltpu.VMEM((S, B_pad, 4 * hidden_size), jnp.float32),  # gates_buf
            pltpu.VMEM((S, B_pad, hidden_size), jnp.float32),      # seq_buf
        ],
        compiler_params=pltpu.CompilerParams(vmem_limit_bytes=64 * 1024 * 1024),
    )(*flat_inputs)
    return out[:B]


# ----------------------------------------------------------------------------
# Deterministic parameter init (synthetic; shapes match the nn.Module)
# ----------------------------------------------------------------------------
def init_params(key, vocab_size, n_layers, input_size, hidden_size):
    H = hidden_size
    keys = iter(jax.random.split(key, 4 + 3 * n_layers))

    def unif(k, shape, fan_in):
        bound = 1.0 / float(fan_in) ** 0.5
        return jax.random.uniform(k, shape, jnp.float32, -bound, bound)

    params = {
        "w_emb": unif(next(keys), (vocab_size, input_size), vocab_size),
        "b_emb": unif(next(keys), (1, input_size), vocab_size),
        "gamma": jnp.ones((1, H), jnp.float32),
        "beta": jnp.zeros((1, H), jnp.float32),
    }
    lstm = []
    for layer in range(n_layers):
        in_dim = input_size if layer == 0 else H
        w_ih = unif(next(keys), (in_dim, 4 * H), H)      # (in, 4H)  [i|f|g|o]
        w_hh = unif(next(keys), (H, 4 * H), H)           # (H, 4H)
        b = unif(next(keys), (1, 4 * H), H)              # b_ih + b_hh combined
        lstm.append((w_ih, w_hh, b))
    params["lstm"] = lstm
    params["w_fc"] = unif(next(keys), (H, vocab_size), H)
    params["b_fc"] = unif(next(keys), (1, vocab_size), H)
    return params


# ----------------------------------------------------------------------------
# Pure-JAX reference for correctness checking
# ----------------------------------------------------------------------------
def reference_forward(src, params, n_layers, hidden_size):
    B, S, V = src.shape
    H = hidden_size
    x = src @ params["w_emb"] + params["b_emb"]          # (B, S, I)
    for (w_ih, w_hh, b) in params["lstm"]:
        h = jnp.zeros((B, H), jnp.float32)
        c = jnp.zeros((B, H), jnp.float32)
        outs = []
        for t in range(S):
            gates = x[:, t, :] @ w_ih + h @ w_hh + b
            i = jax.nn.sigmoid(gates[:, 0:H])
            f = jax.nn.sigmoid(gates[:, H:2 * H])
            g = jnp.tanh(gates[:, 2 * H:3 * H])
            o = jax.nn.sigmoid(gates[:, 3 * H:4 * H])
            c = f * c + i * g
            h = o * jnp.tanh(c)
            outs.append(h)
        x = jnp.stack(outs, axis=1)                      # (B, S, H)
    mean = x.mean(-1, keepdims=True)
    var = jnp.square(x - mean).mean(-1, keepdims=True)
    xn = (x - mean) / jnp.sqrt(var + 1e-5) * params["gamma"] + params["beta"]
    logits = xn @ params["w_fc"] + params["b_fc"]        # (B, S, V)
    return logits.sum(1) / S                             # (B, V)


# ----------------------------------------------------------------------------
if __name__ == "__main__":
    B, S, VOCAB, N_LAYERS, INPUT, HIDDEN = 2, 8, 16, 2, 16, 32

    key = jax.random.PRNGKey(0)
    k_tok, k_par = jax.random.split(key)
    tokens = jax.random.randint(k_tok, (B, S), 0, VOCAB)
    src = jax.nn.one_hot(tokens, VOCAB, dtype=jnp.float32)   # (B, S, V)

    params = init_params(k_par, VOCAB, N_LAYERS, INPUT, HIDDEN)

    out = lstm_model_forward(src, params, N_LAYERS, HIDDEN)
    out = jax.block_until_ready(out)

    ref = reference_forward(src, params, N_LAYERS, HIDDEN)
    assert out.shape == (B, VOCAB), out.shape
    assert jnp.allclose(out, ref, atol=1e-4, rtol=1e-4), (out, ref)

    print("KERNEL_OK")
</pallas_src>

<mosaic_0001>
module attributes {stable_mosaic.version = 11 : i64} {
  func.func @_lstm_model_kernel(%arg0: memref<8x8x16xf32, #tpu.memory_space<vmem>>, %arg1: memref<16x16xf32, #tpu.memory_space<vmem>>, %arg2: memref<1x16xf32, #tpu.memory_space<vmem>>, %arg3: memref<16x128xf32, #tpu.memory_space<vmem>>, %arg4: memref<32x128xf32, #tpu.memory_space<vmem>>, %arg5: memref<1x128xf32, #tpu.memory_space<vmem>>, %arg6: memref<32x128xf32, #tpu.memory_space<vmem>>, %arg7: memref<32x128xf32, #tpu.memory_space<vmem>>, %arg8: memref<1x128xf32, #tpu.memory_space<vmem>>, %arg9: memref<1x32xf32, #tpu.memory_space<vmem>>, %arg10: memref<1x32xf32, #tpu.memory_space<vmem>>, %arg11: memref<32x16xf32, #tpu.memory_space<vmem>>, %arg12: memref<1x16xf32, #tpu.memory_space<vmem>>, %arg13: memref<8x16xf32, #tpu.memory_space<vmem>>, %arg14: memref<8x8x128xf32, #tpu.memory_space<vmem>>, %arg15: memref<8x8x32xf32, #tpu.memory_space<vmem>>) attributes {dimension_semantics = [], scalar_prefetch = 0 : i64, scratch_operands = 2 : i64, tpu.core_type = #tpu.core_type<tc>} {
    %c0 = arith.constant 0 : index
    %c0_0 = arith.constant 0 : index
    %c0_1 = arith.constant 0 : index
    %0 = vector.load %arg0[%c0, %c0_0, %c0_1] : memref<8x8x16xf32, #tpu.memory_space<vmem>>, vector<8x8x16xf32>
    %1 = vector.shape_cast %0 : vector<8x8x16xf32> to vector<64x16xf32>
    %c0_2 = arith.constant 0 : index
    %c0_3 = arith.constant 0 : index
    %2 = vector.load %arg1[%c0_2, %c0_3] : memref<16x16xf32, #tpu.memory_space<vmem>>, vector<16x16xf32>
    %cst = arith.constant dense<0.000000e+00> : vector<64x16xf32>
    %3 = tpu.matmul %1, %2, %cst {dimension_numbers = #tpu.dot_dimension_numbers<[1], [0], [0], [1], [0, 0, 1, 1], [], []>} : vector<64x16xf32>, vector<16x16xf32>, vector<64x16xf32> -> vector<64x16xf32>
    %c0_4 = arith.constant 0 : index
    %c0_5 = arith.constant 0 : index
    %4 = vector.load %arg2[%c0_4, %c0_5] : memref<1x16xf32, #tpu.memory_space<vmem>>, vector<1x16xf32>
    %5 = vector.broadcast %4 : vector<1x16xf32> to vector<64x16xf32>
    %6 = arith.addf %3, %5 : vector<64x16xf32>
    %c0_6 = arith.constant 0 : index
    %c0_7 = arith.constant 0 : index
    %7 = vector.load %arg9[%c0_6, %c0_7] : memref<1x32xf32, #tpu.memory_space<vmem>>, vector<1x32xf32>
    %c0_8 = arith.constant 0 : index
    %c0_9 = arith.constant 0 : index
    %8 = vector.load %arg10[%c0_8, %c0_9] : memref<1x32xf32, #tpu.memory_space<vmem>>, vector<1x32xf32>
    %cst_10 = arith.constant 0.000000e+00 : f32
    %9 = vector.broadcast %cst_10 : f32 to vector<8x32xf32>
    %c0_11 = arith.constant 0 : index
    %c0_12 = arith.constant 0 : index
    %10 = vector.load %arg3[%c0_11, %c0_12] : memref<16x128xf32, #tpu.memory_space<vmem>>, vector<16x128xf32>
    %c0_13 = arith.constant 0 : index
    %c0_14 = arith.constant 0 : index
    %11 = vector.load %arg4[%c0_13, %c0_14] : memref<32x128xf32, #tpu.memory_space<vmem>>, vector<32x128xf32>
    %c0_15 = arith.constant 0 : index
    %c0_16 = arith.constant 0 : index
    %12 = vector.load %arg5[%c0_15, %c0_16] : memref<1x128xf32, #tpu.memory_space<vmem>>, vector<1x128xf32>
    %cst_17 = arith.constant dense<0.000000e+00> : vector<64x128xf32>
    %13 = tpu.matmul %6, %10, %cst_17 {dimension_numbers = #tpu.dot_dimension_numbers<[1], [0], [0], [1], [0, 0, 1, 1], [], []>} : vector<64x16xf32>, vector<16x128xf32>, vector<64x128xf32> -> vector<64x128xf32>
    %14 = vector.broadcast %12 : vector<1x128xf32> to vector<64x128xf32>
    %15 = arith.addf %13, %14 : vector<64x128xf32>
    %16 = vector.shape_cast %15 : vector<64x128xf32> to vector<8x8x128xf32>
    %c0_18 = arith.constant 0 : index
    %c0_19 = arith.constant 0 : index
    %c0_20 = arith.constant 0 : index
    %17 = vector.load %arg14[%c0_18, %c0_19, %c0_20] : memref<8x8x128xf32, #tpu.memory_space<vmem>>, vector<8x8x128xf32>
    tpu.vector_store %arg14[%c0_18, %c0_19, %c0_20], %16 {strides = array<i32>} : memref<8x8x128xf32, #tpu.memory_space<vmem>>, vector<8x8x128xf32>,
    %cst_21 = arith.constant 0.000000e+00 : f32
    %18 = vector.broadcast %cst_21 : f32 to vector<8x32xf32>
    %c0_i32 = arith.constant 0 : i32
    %19 = arith.index_cast %c0_i32 : i32 to index
    %c0_22 = arith.constant 0 : index
    %c0_23 = arith.constant 0 : index
    %20 = vector.load %arg14[%19, %c0_22, %c0_23] : memref<8x8x128xf32, #tpu.memory_space<vmem>>, vector<1x8x128xf32>
    %21 = vector.shape_cast %20 : vector<1x8x128xf32> to vector<8x128xf32>
    %cst_24 = arith.constant dense<0.000000e+00> : vector<8x128xf32>
    %22 = tpu.matmul %18, %11, %cst_24 {dimension_numbers = #tpu.dot_dimension_numbers<[1], [0], [0], [1], [0, 0, 1, 1], [], []>} : vector<8x32xf32>, vector<32x128xf32>, vector<8x128xf32> -> vector<8x128xf32>
    %23 = arith.addf %21, %22 : vector<8x128xf32>
    %24 = vector.extract_strided_slice %23 {offsets = [0, 0], sizes = [8, 32], strides = [1, 1]} : vector<8x128xf32> to vector<8x32xf32>
    %25 = arith.negf %24 : vector<8x32xf32>
    %26 = math.exp %25 : vector<8x32xf32>
    %cst_25 = arith.constant 1.000000e+00 : f32
    %27 = vector.broadcast %cst_25 : f32 to vector<8x32xf32>
    %28 = arith.addf %27, %26 : vector<8x32xf32>
    %29 = arith.divf %27, %28 : vector<8x32xf32>
    %30 = vector.extract_strided_slice %23 {offsets = [0, 32], sizes = [8, 32], strides = [1, 1]} : vector<8x128xf32> to vector<8x32xf32>
    %31 = arith.negf %30 : vector<8x32xf32>
    %32 = math.exp %31 : vector<8x32xf32>
    %cst_26 = arith.constant 1.000000e+00 : f32
    %33 = vector.broadcast %cst_26 : f32 to vector<8x32xf32>
    %34 = arith.addf %33, %32 : vector<8x32xf32>
    %35 = arith.divf %33, %34 : vector<8x32xf32>
    %36 = vector.extract_strided_slice %23 {offsets = [0, 64], sizes = [8, 32], strides = [1, 1]} : vector<8x128xf32> to vector<8x32xf32>
    %37 = math.tanh %36 : vector<8x32xf32>
    %38 = vector.extract_strided_slice %23 {offsets = [0, 96], sizes = [8, 32], strides = [1, 1]} : vector<8x128xf32> to vector<8x32xf32>
    %39 = arith.negf %38 : vector<8x32xf32>
    %40 = math.exp %39 : vector<8x32xf32>
    %cst_27 = arith.constant 1.000000e+00 : f32
    %41 = vector.broadcast %cst_27 : f32 to vector<8x32xf32>
    %42 = arith.addf %41, %40 : vector<8x32xf32>
    %43 = arith.divf %41, %42 : vector<8x32xf32>
    %44 = arith.mulf %35, %18 : vector<8x32xf32>
    %45 = arith.mulf %29, %37 : vector<8x32xf32>
    %46 = arith.addf %44, %45 : vector<8x32xf32>
    %47 = math.tanh %46 : vector<8x32xf32>
    %48 = arith.mulf %43, %47 : vector<8x32xf32>
    %49 = arith.index_cast %c0_i32 : i32 to index
    %c0_28 = arith.constant 0 : index
    %c0_29 = arith.constant 0 : index
    %50 = vector.load %arg15[%49, %c0_28, %c0_29] : memref<8x8x32xf32, #tpu.memory_space<vmem>>, vector<1x8x32xf32>
    %51 = vector.shape_cast %50 : vector<1x8x32xf32> to vector<8x32xf32>
    %52 = vector.shape_cast %48 : vector<8x32xf32> to vector<1x8x32xf32>
    tpu.vector_store %arg15[%49, %c0_28, %c0_29], %52 {strides = array<i32>} : memref<8x8x32xf32, #tpu.memory_space<vmem>>, vector<1x8x32xf32>,
    %c1_i32 = arith.constant 1 : i32
    %53 = arith.index_cast %c1_i32 : i32 to index
    %c0_30 = arith.constant 0 : index
    %c0_31 = arith.constant 0 : index
    %54 = vector.load %arg14[%53, %c0_30, %c0_31] : memref<8x8x128xf32, #tpu.memory_space<vmem>>, vector<1x8x128xf32>
    %55 = vector.shape_cast %54 : vector<1x8x128xf32> to vector<8x128xf32>
    %cst_32 = arith.constant dense<0.000000e+00> : vector<8x128xf32>
    %56 = tpu.matmul %48, %11, %cst_32 {dimension_numbers = #tpu.dot_dimension_numbers<[1], [0], [0], [1], [0, 0, 1, 1], [], []>} : vector<8x32xf32>, vector<32x128xf32>, vector<8x128xf32> -> vector<8x128xf32>
    %57 = arith.addf %55, %56 : vector<8x128xf32>
    %58 = vector.extract_strided_slice %57 {offsets = [0, 0], sizes = [8, 32], strides = [1, 1]} : vector<8x128xf32> to vector<8x32xf32>
    %59 = arith.negf %58 : vector<8x32xf32>
    %60 = math.exp %59 : vector<8x32xf32>
    %cst_33 = arith.constant 1.000000e+00 : f32
    %61 = vector.broadcast %cst_33 : f32 to vector<8x32xf32>
    %62 = arith.addf %61, %60 : vector<8x32xf32>
    %63 = arith.divf %61, %62 : vector<8x32xf32>
    %64 = vector.extract_strided_slice %57 {offsets = [0, 32], sizes = [8, 32], strides = [1, 1]} : vector<8x128xf32> to vector<8x32xf32>
    %65 = arith.negf %64 : vector<8x32xf32>
    %66 = math.exp %65 : vector<8x32xf32>
    %cst_34 = arith.constant 1.000000e+00 : f32
    %67 = vector.broadcast %cst_34 : f32 to vector<8x32xf32>
    %68 = arith.addf %67, %66 : vector<8x32xf32>
    %69 = arith.divf %67, %68 : vector<8x32xf32>
    %70 = vector.extract_strided_slice %57 {offsets = [0, 64], sizes = [8, 32], strides = [1, 1]} : vector<8x128xf32> to vector<8x32xf32>
    %71 = math.tanh %70 : vector<8x32xf32>
    %72 = vector.extract_strided_slice %57 {offsets = [0, 96], sizes = [8, 32], strides = [1, 1]} : vector<8x128xf32> to vector<8x32xf32>
    %73 = arith.negf %72 : vector<8x32xf32>
    %74 = math.exp %73 : vector<8x32xf32>
    %cst_35 = arith.constant 1.000000e+00 : f32
    %75 = vector.broadcast %cst_35 : f32 to vector<8x32xf32>
    %76 = arith.addf %75, %74 : vector<8x32xf32>
    %77 = arith.divf %75, %76 : vector<8x32xf32>
    %78 = arith.mulf %69, %46 : vector<8x32xf32>
    %79 = arith.mulf %63, %71 : vector<8x32xf32>
    %80 = arith.addf %78, %79 : vector<8x32xf32>
    %81 = math.tanh %80 : vector<8x32xf32>
    %82 = arith.mulf %77, %81 : vector<8x32xf32>
    %83 = arith.index_cast %c1_i32 : i32 to index
    %c0_36 = arith.constant 0 : index
    %c0_37 = arith.constant 0 : index
    %84 = vector.load %arg15[%83, %c0_36, %c0_37] : memref<8x8x32xf32, #tpu.memory_space<vmem>>, vector<1x8x32xf32>
    %85 = vector.shape_cast %84 : vector<1x8x32xf32> to vector<8x32xf32>
    %86 = vector.shape_cast %82 : vector<8x32xf32> to vector<1x8x32xf32>
    tpu.vector_store %arg15[%83, %c0_36, %c0_37], %86 {strides = array<i32>} : memref<8x8x32xf32, #tpu.memory_space<vmem>>, vector<1x8x32xf32>,
    %c2_i32 = arith.constant 2 : i32
    %87 = arith.index_cast %c2_i32 : i32 to index
    %c0_38 = arith.constant 0 : index
    %c0_39 = arith.constant 0 : index
    %88 = vector.load %arg14[%87, %c0_38, %c0_39] : memref<8x8x128xf32, #tpu.memory_space<vmem>>, vector<1x8x128xf32>
    %89 = vector.shape_cast %88 : vector<1x8x128xf32> to vector<8x128xf32>
    %cst_40 = arith.constant dense<0.000000e+00> : vector<8x128xf32>
    %90 = tpu.matmul %82, %11, %cst_40 {dimension_numbers = #tpu.dot_dimension_numbers<[1], [0], [0], [1], [0, 0, 1, 1], [], []>} : vector<8x32xf32>, vector<32x128xf32>, vector<8x128xf32> -> vector<8x128xf32>
    %91 = arith.addf %89, %90 : vector<8x128xf32>
    %92 = vector.extract_strided_slice %91 {offsets = [0, 0], sizes = [8, 32], strides = [1, 1]} : vector<8x128xf32> to vector<8x32xf32>
    %93 = arith.negf %92 : vector<8x32xf32>
    %94 = math.exp %93 : vector<8x32xf32>
    %cst_41 = arith.constant 1.000000e+00 : f32
    %95 = vector.broadcast %cst_41 : f32 to vector<8x32xf32>
    %96 = arith.addf %95, %94 : vector<8x32xf32>
    %97 = arith.divf %95, %96 : vector<8x32xf32>
    %98 = vector.extract_strided_slice %91 {offsets = [0, 32], sizes = [8, 32], strides = [1, 1]} : vector<8x128xf32> to vector<8x32xf32>
    %99 = arith.negf %98 : vector<8x32xf32>
    %100 = math.exp %99 : vector<8x32xf32>
    %cst_42 = arith.constant 1.000000e+00 : f32
    %101 = vector.broadcast %cst_42 : f32 to vector<8x32xf32>
    %102 = arith.addf %101, %100 : vector<8x32xf32>
    %103 = arith.divf %101, %102 : vector<8x32xf32>
    %104 = vector.extract_strided_slice %91 {offsets = [0, 64], sizes = [8, 32], strides = [1, 1]} : vector<8x128xf32> to vector<8x32xf32>
    %105 = math.tanh %104 : vector<8x32xf32>
    %106 = vector.extract_strided_slice %91 {offsets = [0, 96], sizes = [8, 32], strides = [1, 1]} : vector<8x128xf32> to vector<8x32xf32>
    %107 = arith.negf %106 : vector<8x32xf32>
    %108 = math.exp %107 : vector<8x32xf32>
    %cst_43 = arith.constant 1.000000e+00 : f32
    %109 = vector.broadcast %cst_43 : f32 to vector<8x32xf32>
    %110 = arith.addf %109, %108 : vector<8x32xf32>
    %111 = arith.divf %109, %110 : vector<8x32xf32>
    %112 = arith.mulf %103, %80 : vector<8x32xf32>
    %113 = arith.mulf %97, %105 : vector<8x32xf32>
    %114 = arith.addf %112, %113 : vector<8x32xf32>
    %115 = math.tanh %114 : vector<8x32xf32>
    %116 = arith.mulf %111, %115 : vector<8x32xf32>
    %117 = arith.index_cast %c2_i32 : i32 to index
    %c0_44 = arith.constant 0 : index
    %c0_45 = arith.constant 0 : index
    %118 = vector.load %arg15[%117, %c0_44, %c0_45] : memref<8x8x32xf32, #tpu.memory_space<vmem>>, vector<1x8x32xf32>
    %119 = vector.shape_cast %118 : vector<1x8x32xf32> to vector<8x32xf32>
    %120 = vector.shape_cast %116 : vector<8x32xf32> to vector<1x8x32xf32>
    tpu.vector_store %arg15[%117, %c0_44, %c0_45], %120 {strides = array<i32>} : memref<8x8x32xf32, #tpu.memory_space<vmem>>, vector<1x8x32xf32>,
    %c3_i32 = arith.constant 3 : i32
    %121 = arith.index_cast %c3_i32 : i32 to index
    %c0_46 = arith.constant 0 : index
    %c0_47 = arith.constant 0 : index
    %122 = vector.load %arg14[%121, %c0_46, %c0_47] : memref<8x8x128xf32, #tpu.memory_space<vmem>>, vector<1x8x128xf32>
    %123 = vector.shape_cast %122 : vector<1x8x128xf32> to vector<8x128xf32>
    %cst_48 = arith.constant dense<0.000000e+00> : vector<8x128xf32>
    %124 = tpu.matmul %116, %11, %cst_48 {dimension_numbers = #tpu.dot_dimension_numbers<[1], [0], [0], [1], [0, 0, 1, 1], [], []>} : vector<8x32xf32>, vector<32x128xf32>, vector<8x128xf32> -> vector<8x128xf32>
    %125 = arith.addf %123, %124 : vector<8x128xf32>
    %126 = vector.extract_strided_slice %125 {offsets = [0, 0], sizes = [8, 32], strides = [1, 1]} : vector<8x128xf32> to vector<8x32xf32>
    %127 = arith.negf %126 : vector<8x32xf32>
    %128 = math.exp %127 : vector<8x32xf32>
    %cst_49 = arith.constant 1.000000e+00 : f32
    %129 = vector.broadcast %cst_49 : f32 to vector<8x32xf32>
    %130 = arith.addf %129, %128 : vector<8x32xf32>
    %131 = arith.divf %129, %130 : vector<8x32xf32>
    %132 = vector.extract_strided_slice %125 {offsets = [0, 32], sizes = [8, 32], strides = [1, 1]} : vector<8x128xf32> to vector<8x32xf32>
    %133 = arith.negf %132 : vector<8x32xf32>
    %134 = math.exp %133 : vector<8x32xf32>
    %cst_50 = arith.constant 1.000000e+00 : f32
    %135 = vector.broadcast %cst_50 : f32 to vector<8x32xf32>
    %136 = arith.addf %135, %134 : vector<8x32xf32>
    %137 = arith.divf %135, %136 : vector<8x32xf32>
    %138 = vector.extract_strided_slice %125 {offsets = [0, 64], sizes = [8, 32], strides = [1, 1]} : vector<8x128xf32> to vector<8x32xf32>
    %139 = math.tanh %138 : vector<8x32xf32>
    %140 = vector.extract_strided_slice %125 {offsets = [0, 96], sizes = [8, 32], strides = [1, 1]} : vector<8x128xf32> to vector<8x32xf32>
    %141 = arith.negf %140 : vector<8x32xf32>
    %142 = math.exp %141 : vector<8x32xf32>
    %cst_51 = arith.constant 1.000000e+00 : f32
    %143 = vector.broadcast %cst_51 : f32 to vector<8x32xf32>
    %144 = arith.addf %143, %142 : vector<8x32xf32>
    %145 = arith.divf %143, %144 : vector<8x32xf32>
    %146 = arith.mulf %137, %114 : vector<8x32xf32>
    %147 = arith.mulf %131, %139 : vector<8x32xf32>
    %148 = arith.addf %146, %147 : vector<8x32xf32>
    %149 = math.tanh %148 : vector<8x32xf32>
    %150 = arith.mulf %145, %149 : vector<8x32xf32>
    %151 = arith.index_cast %c3_i32 : i32 to index
    %c0_52 = arith.constant 0 : index
    %c0_53 = arith.constant 0 : index
    %152 = vector.load %arg15[%151, %c0_52, %c0_53] : memref<8x8x32xf32, #tpu.memory_space<vmem>>, vector<1x8x32xf32>
    %153 = vector.shape_cast %152 : vector<1x8x32xf32> to vector<8x32xf32>
    %154 = vector.shape_cast %150 : vector<8x32xf32> to vector<1x8x32xf32>
    tpu.vector_store %arg15[%151, %c0_52, %c0_53], %154 {strides = array<i32>} : memref<8x8x32xf32, #tpu.memory_space<vmem>>, vector<1x8x32xf32>,
    %c4_i32 = arith.constant 4 : i32
    %155 = arith.index_cast %c4_i32 : i32 to index
    %c0_54 = arith.constant 0 : index
    %c0_55 = arith.constant 0 : index
    %156 = vector.load %arg14[%155, %c0_54, %c0_55] : memref<8x8x128xf32, #tpu.memory_space<vmem>>, vector<1x8x128xf32>
    %157 = vector.shape_cast %156 : vector<1x8x128xf32> to vector<8x128xf32>
    %cst_56 = arith.constant dense<0.000000e+00> : vector<8x128xf32>
    %158 = tpu.matmul %150, %11, %cst_56 {dimension_numbers = #tpu.dot_dimension_numbers<[1], [0], [0], [1], [0, 0, 1, 1], [], []>} : vector<8x32xf32>, vector<32x128xf32>, vector<8x128xf32> -> vector<8x128xf32>
    %159 = arith.addf %157, %158 : vector<8x128xf32>
    %160 = vector.extract_strided_slice %159 {offsets = [0, 0], sizes = [8, 32], strides = [1, 1]} : vector<8x128xf32> to vector<8x32xf32>
    %161 = arith.negf %160 : vector<8x32xf32>
    %162 = math.exp %161 : vector<8x32xf32>
    %cst_57 = arith.constant 1.000000e+00 : f32
    %163 = vector.broadcast %cst_57 : f32 to vector<8x32xf32>
    %164 = arith.addf %163, %162 : vector<8x32xf32>
    %165 = arith.divf %163, %164 : vector<8x32xf32>
    %166 = vector.extract_strided_slice %159 {offsets = [0, 32], sizes = [8, 32], strides = [1, 1]} : vector<8x128xf32> to vector<8x32xf32>
    %167 = arith.negf %166 : vector<8x32xf32>
    %168 = math.exp %167 : vector<8x32xf32>
    %cst_58 = arith.constant 1.000000e+00 : f32
    %169 = vector.broadcast %cst_58 : f32 to vector<8x32xf32>
    %170 = arith.addf %169, %168 : vector<8x32xf32>
    %171 = arith.divf %169, %170 : vector<8x32xf32>
    %172 = vector.extract_strided_slice %159 {offsets = [0, 64], sizes = [8, 32], strides = [1, 1]} : vector<8x128xf32> to vector<8x32xf32>
    %173 = math.tanh %172 : vector<8x32xf32>
    %174 = vector.extract_strided_slice %159 {offsets = [0, 96], sizes = [8, 32], strides = [1, 1]} : vector<8x128xf32> to vector<8x32xf32>
    %175 = arith.negf %174 : vector<8x32xf32>
    %176 = math.exp %175 : vector<8x32xf32>
    %cst_59 = arith.constant 1.000000e+00 : f32
    %177 = vector.broadcast %cst_59 : f32 to vector<8x32xf32>
    %178 = arith.addf %177, %176 : vector<8x32xf32>
    %179 = arith.divf %177, %178 : vector<8x32xf32>
    %180 = arith.mulf %171, %148 : vector<8x32xf32>
    %181 = arith.mulf %165, %173 : vector<8x32xf32>
    %182 = arith.addf %180, %181 : vector<8x32xf32>
    %183 = math.tanh %182 : vector<8x32xf32>
    %184 = arith.mulf %179, %183 : vector<8x32xf32>
    %185 = arith.index_cast %c4_i32 : i32 to index
    %c0_60 = arith.constant 0 : index
    %c0_61 = arith.constant 0 : index
    %186 = vector.load %arg15[%185, %c0_60, %c0_61] : memref<8x8x32xf32, #tpu.memory_space<vmem>>, vector<1x8x32xf32>
    %187 = vector.shape_cast %186 : vector<1x8x32xf32> to vector<8x32xf32>
    %188 = vector.shape_cast %184 : vector<8x32xf32> to vector<1x8x32xf32>
    tpu.vector_store %arg15[%185, %c0_60, %c0_61], %188 {strides = array<i32>} : memref<8x8x32xf32, #tpu.memory_space<vmem>>, vector<1x8x32xf32>,
    %c5_i32 = arith.constant 5 : i32
    %189 = arith.index_cast %c5_i32 : i32 to index
    %c0_62 = arith.constant 0 : index
    %c0_63 = arith.constant 0 : index
    %190 = vector.load %arg14[%189, %c0_62, %c0_63] : memref<8x8x128xf32, #tpu.memory_space<vmem>>, vector<1x8x128xf32>
    %191 = vector.shape_cast %190 : vector<1x8x128xf32> to vector<8x128xf32>
    %cst_64 = arith.constant dense<0.000000e+00> : vector<8x128xf32>
    %192 = tpu.matmul %184, %11, %cst_64 {dimension_numbers = #tpu.dot_dimension_numbers<[1], [0], [0], [1], [0, 0, 1, 1], [], []>} : vector<8x32xf32>, vector<32x128xf32>, vector<8x128xf32> -> vector<8x128xf32>
    %193 = arith.addf %191, %192 : vector<8x128xf32>
    %194 = vector.extract_strided_slice %193 {offsets = [0, 0], sizes = [8, 32], strides = [1, 1]} : vector<8x128xf32> to vector<8x32xf32>
    %195 = arith.negf %194 : vector<8x32xf32>
    %196 = math.exp %195 : vector<8x32xf32>
    %cst_65 = arith.constant 1.000000e+00 : f32
    %197 = vector.broadcast %cst_65 : f32 to vector<8x32xf32>
    %198 = arith.addf %197, %196 : vector<8x32xf32>
    %199 = arith.divf %197, %198 : vector<8x32xf32>
    %200 = vector.extract_strided_slice %193 {offsets = [0, 32], sizes = [8, 32], strides = [1, 1]} : vector<8x128xf32> to vector<8x32xf32>
    %201 = arith.negf %200 : vector<8x32xf32>
    %202 = math.exp %201 : vector<8x32xf32>
    %cst_66 = arith.constant 1.000000e+00 : f32
    %203 = vector.broadcast %cst_66 : f32 to vector<8x32xf32>
    %204 = arith.addf %203, %202 : vector<8x32xf32>
    %205 = arith.divf %203, %204 : vector<8x32xf32>
    %206 = vector.extract_strided_slice %193 {offsets = [0, 64], sizes = [8, 32], strides = [1, 1]} : vector<8x128xf32> to vector<8x32xf32>
    %207 = math.tanh %206 : vector<8x32xf32>
    %208 = vector.extract_strided_slice %193 {offsets = [0, 96], sizes = [8, 32], strides = [1, 1]} : vector<8x128xf32> to vector<8x32xf32>
    %209 = arith.negf %208 : vector<8x32xf32>
    %210 = math.exp %209 : vector<8x32xf32>
    %cst_67 = arith.constant 1.000000e+00 : f32
    %211 = vector.broadcast %cst_67 : f32 to vector<8x32xf32>
    %212 = arith.addf %211, %210 : vector<8x32xf32>
    %213 = arith.divf %211, %212 : vector<8x32xf32>
    %214 = arith.mulf %205, %182 : vector<8x32xf32>
    %215 = arith.mulf %199, %207 : vector<8x32xf32>
    %216 = arith.addf %214, %215 : vector<8x32xf32>
    %217 = math.tanh %216 : vector<8x32xf32>
    %218 = arith.mulf %213, %217 : vector<8x32xf32>
    %219 = arith.index_cast %c5_i32 : i32 to index
    %c0_68 = arith.constant 0 : index
    %c0_69 = arith.constant 0 : index
    %220 = vector.load %arg15[%219, %c0_68, %c0_69] : memref<8x8x32xf32, #tpu.memory_space<vmem>>, vector<1x8x32xf32>
    %221 = vector.shape_cast %220 : vector<1x8x32xf32> to vector<8x32xf32>
    %222 = vector.shape_cast %218 : vector<8x32xf32> to vector<1x8x32xf32>
    tpu.vector_store %arg15[%219, %c0_68, %c0_69], %222 {strides = array<i32>} : memref<8x8x32xf32, #tpu.memory_space<vmem>>, vector<1x8x32xf32>,
    %c6_i32 = arith.constant 6 : i32
    %223 = arith.index_cast %c6_i32 : i32 to index
    %c0_70 = arith.constant 0 : index
    %c0_71 = arith.constant 0 : index
    %224 = vector.load %arg14[%223, %c0_70, %c0_71] : memref<8x8x128xf32, #tpu.memory_space<vmem>>, vector<1x8x128xf32>
    %225 = vector.shape_cast %224 : vector<1x8x128xf32> to vector<8x128xf32>
    %cst_72 = arith.constant dense<0.000000e+00> : vector<8x128xf32>
    %226 = tpu.matmul %218, %11, %cst_72 {dimension_numbers = #tpu.dot_dimension_numbers<[1], [0], [0], [1], [0, 0, 1, 1], [], []>} : vector<8x32xf32>, vector<32x128xf32>, vector<8x128xf32> -> vector<8x128xf32>
    %227 = arith.addf %225, %226 : vector<8x128xf32>
    %228 = vector.extract_strided_slice %227 {offsets = [0, 0], sizes = [8, 32], strides = [1, 1]} : vector<8x128xf32> to vector<8x32xf32>
    %229 = arith.negf %228 : vector<8x32xf32>
    %230 = math.exp %229 : vector<8x32xf32>
    %cst_73 = arith.constant 1.000000e+00 : f32
    %231 = vector.broadcast %cst_73 : f32 to vector<8x32xf32>
    %232 = arith.addf %231, %230 : vector<8x32xf32>
    %233 = arith.divf %231, %232 : vector<8x32xf32>
    %234 = vector.extract_strided_slice %227 {offsets = [0, 32], sizes = [8, 32], strides = [1, 1]} : vector<8x128xf32> to vector<8x32xf32>
    %235 = arith.negf %234 : vector<8x32xf32>
    %236 = math.exp %235 : vector<8x32xf32>
    %cst_74 = arith.constant 1.000000e+00 : f32
    %237 = vector.broadcast %cst_74 : f32 to vector<8x32xf32>
    %238 = arith.addf %237, %236 : vector<8x32xf32>
    %239 = arith.divf %237, %238 : vector<8x32xf32>
    %240 = vector.extract_strided_slice %227 {offsets = [0, 64], sizes = [8, 32], strides = [1, 1]} : vector<8x128xf32> to vector<8x32xf32>
    %241 = math.tanh %240 : vector<8x32xf32>
    %242 = vector.extract_strided_slice %227 {offsets = [0, 96], sizes = [8, 32], strides = [1, 1]} : vector<8x128xf32> to vector<8x32xf32>
    %243 = arith.negf %242 : vector<8x32xf32>
    %244 = math.exp %243 : vector<8x32xf32>
    %cst_75 = arith.constant 1.000000e+00 : f32
    %245 = vector.broadcast %cst_75 : f32 to vector<8x32xf32>
    %246 = arith.addf %245, %244 : vector<8x32xf32>
    %247 = arith.divf %245, %246 : vector<8x32xf32>
    %248 = arith.mulf %239, %216 : vector<8x32xf32>
    %249 = arith.mulf %233, %241 : vector<8x32xf32>
    %250 = arith.addf %248, %249 : vector<8x32xf32>
    %251 = math.tanh %250 : vector<8x32xf32>
    %252 = arith.mulf %247, %251 : vector<8x32xf32>
    %253 = arith.index_cast %c6_i32 : i32 to index
    %c0_76 = arith.constant 0 : index
    %c0_77 = arith.constant 0 : index
    %254 = vector.load %arg15[%253, %c0_76, %c0_77] : memref<8x8x32xf32, #tpu.memory_space<vmem>>, vector<1x8x32xf32>
    %255 = vector.shape_cast %254 : vector<1x8x32xf32> to vector<8x32xf32>
    %256 = vector.shape_cast %252 : vector<8x32xf32> to vector<1x8x32xf32>
    tpu.vector_store %arg15[%253, %c0_76, %c0_77], %256 {strides = array<i32>} : memref<8x8x32xf32, #tpu.memory_space<vmem>>, vector<1x8x32xf32>,
    %c7_i32 = arith.constant 7 : i32
    %257 = arith.index_cast %c7_i32 : i32 to index
    %c0_78 = arith.constant 0 : index
    %c0_79 = arith.constant 0 : index
    %258 = vector.load %arg14[%257, %c0_78, %c0_79] : memref<8x8x128xf32, #tpu.memory_space<vmem>>, vector<1x8x128xf32>
    %259 = vector.shape_cast %258 : vector<1x8x128xf32> to vector<8x128xf32>
    %cst_80 = arith.constant dense<0.000000e+00> : vector<8x128xf32>
    %260 = tpu.matmul %252, %11, %cst_80 {dimension_numbers = #tpu.dot_dimension_numbers<[1], [0], [0], [1], [0, 0, 1, 1], [], []>} : vector<8x32xf32>, vector<32x128xf32>, vector<8x128xf32> -> vector<8x128xf32>
    %261 = arith.addf %259, %260 : vector<8x128xf32>
    %262 = vector.extract_strided_slice %261 {offsets = [0, 0], sizes = [8, 32], strides = [1, 1]} : vector<8x128xf32> to vector<8x32xf32>
    %263 = arith.negf %262 : vector<8x32xf32>
    %264 = math.exp %263 : vector<8x32xf32>
    %cst_81 = arith.constant 1.000000e+00 : f32
    %265 = vector.broadcast %cst_81 : f32 to vector<8x32xf32>
    %266 = arith.addf %265, %264 : vector<8x32xf32>
    %267 = arith.divf %265, %266 : vector<8x32xf32>
    %268 = vector.extract_strided_slice %261 {offsets = [0, 32], sizes = [8, 32], strides = [1, 1]} : vector<8x128xf32> to vector<8x32xf32>
    %269 = arith.negf %268 : vector<8x32xf32>
    %270 = math.exp %269 : vector<8x32xf32>
    %cst_82 = arith.constant 1.000000e+00 : f32
    %271 = vector.broadcast %cst_82 : f32 to vector<8x32xf32>
    %272 = arith.addf %271, %270 : vector<8x32xf32>
    %273 = arith.divf %271, %272 : vector<8x32xf32>
    %274 = vector.extract_strided_slice %261 {offsets = [0, 64], sizes = [8, 32], strides = [1, 1]} : vector<8x128xf32> to vector<8x32xf32>
    %275 = math.tanh %274 : vector<8x32xf32>
    %276 = vector.extract_strided_slice %261 {offsets = [0, 96], sizes = [8, 32], strides = [1, 1]} : vector<8x128xf32> to vector<8x32xf32>
    %277 = arith.negf %276 : vector<8x32xf32>
    %278 = math.exp %277 : vector<8x32xf32>
    %cst_83 = arith.constant 1.000000e+00 : f32
    %279 = vector.broadcast %cst_83 : f32 to vector<8x32xf32>
    %280 = arith.addf %279, %278 : vector<8x32xf32>
    %281 = arith.divf %279, %280 : vector<8x32xf32>
    %282 = arith.mulf %273, %250 : vector<8x32xf32>
    %283 = arith.mulf %267, %275 : vector<8x32xf32>
    %284 = arith.addf %282, %283 : vector<8x32xf32>
    %285 = math.tanh %284 : vector<8x32xf32>
    %286 = arith.mulf %281, %285 : vector<8x32xf32>
    %287 = arith.index_cast %c7_i32 : i32 to index
    %c0_84 = arith.constant 0 : index
    %c0_85 = arith.constant 0 : index
    %288 = vector.load %arg15[%287, %c0_84, %c0_85] : memref<8x8x32xf32, #tpu.memory_space<vmem>>, vector<1x8x32xf32>
    %289 = vector.shape_cast %288 : vector<1x8x32xf32> to vector<8x32xf32>
    %290 = vector.shape_cast %286 : vector<8x32xf32> to vector<1x8x32xf32>
    tpu.vector_store %arg15[%287, %c0_84, %c0_85], %290 {strides = array<i32>} : memref<8x8x32xf32, #tpu.memory_space<vmem>>, vector<1x8x32xf32>,
    %c8_i32 = arith.constant 8 : i32
    %c0_86 = arith.constant 0 : index
    %c0_87 = arith.constant 0 : index
    %291 = vector.load %arg6[%c0_86, %c0_87] : memref<32x128xf32, #tpu.memory_space<vmem>>, vector<32x128xf32>
    %c0_88 = arith.constant 0 : index
    %c0_89 = arith.constant 0 : index
    %292 = vector.load %arg7[%c0_88, %c0_89] : memref<32x128xf32, #tpu.memory_space<vmem>>, vector<32x128xf32>
    %c0_90 = arith.constant 0 : index
    %c0_91 = arith.constant 0 : index
    %293 = vector.load %arg8[%c0_90, %c0_91] : memref<1x128xf32, #tpu.memory_space<vmem>>, vector<1x128xf32>
    %c0_92 = arith.constant 0 : index
    %c0_93 = arith.constant 0 : index
    %c0_94 = arith.constant 0 : index
    %294 = vector.load %arg15[%c0_92, %c0_93, %c0_94] : memref<8x8x32xf32, #tpu.memory_space<vmem>>, vector<8x8x32xf32>
    %295 = vector.shape_cast %294 : vector<8x8x32xf32> to vector<64x32xf32>
    %cst_95 = arith.constant dense<0.000000e+00> : vector<64x128xf32>
    %296 = tpu.matmul %295, %291, %cst_95 {dimension_numbers = #tpu.dot_dimension_numbers<[1], [0], [0], [1], [0, 0, 1, 1], [], []>} : vector<64x32xf32>, vector<32x128xf32>, vector<64x128xf32> -> vector<64x128xf32>
    %297 = vector.broadcast %293 : vector<1x128xf32> to vector<64x128xf32>
    %298 = arith.addf %296, %297 : vector<64x128xf32>
    %299 = vector.shape_cast %298 : vector<64x128xf32> to vector<8x8x128xf32>
    %c0_96 = arith.constant 0 : index
    %c0_97 = arith.constant 0 : index
    %c0_98 = arith.constant 0 : index
    %300 = vector.load %arg14[%c0_96, %c0_97, %c0_98] : memref<8x8x128xf32, #tpu.memory_space<vmem>>, vector<8x8x128xf32>
    tpu.vector_store %arg14[%c0_96, %c0_97, %c0_98], %299 {strides = array<i32>} : memref<8x8x128xf32, #tpu.memory_space<vmem>>, vector<8x8x128xf32>,
    %cst_99 = arith.constant 0.000000e+00 : f32
    %301 = vector.broadcast %cst_99 : f32 to vector<8x32xf32>
    %c0_i32_100 = arith.constant 0 : i32
    %302 = arith.index_cast %c0_i32_100 : i32 to index
    %c0_101 = arith.constant 0 : index
    %c0_102 = arith.constant 0 : index
    %303 = vector.load %arg14[%302, %c0_101, %c0_102] : memref<8x8x128xf32, #tpu.memory_space<vmem>>, vector<1x8x128xf32>
    %304 = vector.shape_cast %303 : vector<1x8x128xf32> to vector<8x128xf32>
    %cst_103 = arith.constant dense<0.000000e+00> : vector<8x128xf32>
    %305 = tpu.matmul %301, %292, %cst_103 {dimension_numbers = #tpu.dot_dimension_numbers<[1], [0], [0], [1], [0, 0, 1, 1], [], []>} : vector<8x32xf32>, vector<32x128xf32>, vector<8x128xf32> -> vector<8x128xf32>
    %306 = arith.addf %304, %305 : vector<8x128xf32>
    %307 = vector.extract_strided_slice %306 {offsets = [0, 0], sizes = [8, 32], strides = [1, 1]} : vector<8x128xf32> to vector<8x32xf32>
    %308 = arith.negf %307 : vector<8x32xf32>
    %309 = math.exp %308 : vector<8x32xf32>
    %cst_104 = arith.constant 1.000000e+00 : f32
    %310 = vector.broadcast %cst_104 : f32 to vector<8x32xf32>
    %311 = arith.addf %310, %309 : vector<8x32xf32>
    %312 = arith.divf %310, %311 : vector<8x32xf32>
    %313 = vector.extract_strided_slice %306 {offsets = [0, 32], sizes = [8, 32], strides = [1, 1]} : vector<8x128xf32> to vector<8x32xf32>
    %314 = arith.negf %313 : vector<8x32xf32>
    %315 = math.exp %314 : vector<8x32xf32>
    %cst_105 = arith.constant 1.000000e+00 : f32
    %316 = vector.broadcast %cst_105 : f32 to vector<8x32xf32>
    %317 = arith.addf %316, %315 : vector<8x32xf32>
    %318 = arith.divf %316, %317 : vector<8x32xf32>
    %319 = vector.extract_strided_slice %306 {offsets = [0, 64], sizes = [8, 32], strides = [1, 1]} : vector<8x128xf32> to vector<8x32xf32>
    %320 = math.tanh %319 : vector<8x32xf32>
    %321 = vector.extract_strided_slice %306 {offsets = [0, 96], sizes = [8, 32], strides = [1, 1]} : vector<8x128xf32> to vector<8x32xf32>
    %322 = arith.negf %321 : vector<8x32xf32>
    %323 = math.exp %322 : vector<8x32xf32>
    %cst_106 = arith.constant 1.000000e+00 : f32
    %324 = vector.broadcast %cst_106 : f32 to vector<8x32xf32>
    %325 = arith.addf %324, %323 : vector<8x32xf32>
    %326 = arith.divf %324, %325 : vector<8x32xf32>
    %327 = arith.mulf %318, %301 : vector<8x32xf32>
    %328 = arith.mulf %312, %320 : vector<8x32xf32>
    %329 = arith.addf %327, %328 : vector<8x32xf32>
    %330 = math.tanh %329 : vector<8x32xf32>
    %331 = arith.mulf %326, %330 : vector<8x32xf32>
    %cst_107 = arith.constant dense<0.000000e+00> : vector<8xf32>
    %332 = vector.multi_reduction <add>, %331, %cst_107 [1] : vector<8x32xf32> to vector<8xf32>
    %333 = vector.shape_cast %332 : vector<8xf32> to vector<8x1xf32>
    %cst_108 = arith.constant 3.200000e+01 : f32
    %334 = vector.broadcast %cst_108 : f32 to vector<8x1xf32>
    %335 = arith.divf %333, %334 : vector<8x1xf32>
    %336 = vector.broadcast %335 : vector<8x1xf32> to vector<8x32xf32>
    %337 = arith.subf %331, %336 : vector<8x32xf32>
    %338 = arith.mulf %337, %337 : vector<8x32xf32>
    %cst_109 = arith.constant dense<0.000000e+00> : vector<8xf32>
    %339 = vector.multi_reduction <add>, %338, %cst_109 [1] : vector<8x32xf32> to vector<8xf32>
    %340 = vector.shape_cast %339 : vector<8xf32> to vector<8x1xf32>
    %cst_110 = arith.constant 3.200000e+01 : f32
    %341 = vector.broadcast %cst_110 : f32 to vector<8x1xf32>
    %342 = arith.divf %340, %341 : vector<8x1xf32>
    %343 = vector.broadcast %335 : vector<8x1xf32> to vector<8x32xf32>
    %344 = arith.subf %331, %343 : vector<8x32xf32>
    %cst_111 = arith.constant 9.99999974E-6 : f32
    %345 = vector.broadcast %cst_111 : f32 to vector<8x1xf32>
    %346 = arith.addf %342, %345 : vector<8x1xf32>
    %347 = math.rsqrt %346 : vector<8x1xf32>
    %348 = vector.broadcast %347 : vector<8x1xf32> to vector<8x32xf32>
    %349 = arith.mulf %344, %348 : vector<8x32xf32>
    %350 = vector.broadcast %7 : vector<1x32xf32> to vector<8x32xf32>
    %351 = arith.mulf %349, %350 : vector<8x32xf32>
    %352 = vector.broadcast %8 : vector<1x32xf32> to vector<8x32xf32>
    %353 = arith.addf %351, %352 : vector<8x32xf32>
    %354 = arith.addf %9, %353 : vector<8x32xf32>
    %c1_i32_112 = arith.constant 1 : i32
    %355 = arith.index_cast %c1_i32_112 : i32 to index
    %c0_113 = arith.constant 0 : index
    %c0_114 = arith.constant 0 : index
    %356 = vector.load %arg14[%355, %c0_113, %c0_114] : memref<8x8x128xf32, #tpu.memory_space<vmem>>, vector<1x8x128xf32>
    %357 = vector.shape_cast %356 : vector<1x8x128xf32> to vector<8x128xf32>
    %cst_115 = arith.constant dense<0.000000e+00> : vector<8x128xf32>
    %358 = tpu.matmul %331, %292, %cst_115 {dimension_numbers = #tpu.dot_dimension_numbers<[1], [0], [0], [1], [0, 0, 1, 1], [], []>} : vector<8x32xf32>, vector<32x128xf32>, vector<8x128xf32> -> vector<8x128xf32>
    %359 = arith.addf %357, %358 : vector<8x128xf32>
    %360 = vector.extract_strided_slice %359 {offsets = [0, 0], sizes = [8, 32], strides = [1, 1]} : vector<8x128xf32> to vector<8x32xf32>
    %361 = arith.negf %360 : vector<8x32xf32>
    %362 = math.exp %361 : vector<8x32xf32>
    %cst_116 = arith.constant 1.000000e+00 : f32
    %363 = vector.broadcast %cst_116 : f32 to vector<8x32xf32>
    %364 = arith.addf %363, %362 : vector<8x32xf32>
    %365 = arith.divf %363, %364 : vector<8x32xf32>
    %366 = vector.extract_strided_slice %359 {offsets = [0, 32], sizes = [8, 32], strides = [1, 1]} : vector<8x128xf32> to vector<8x32xf32>
    %367 = arith.negf %366 : vector<8x32xf32>
    %368 = math.exp %367 : vector<8x32xf32>
    %cst_117 = arith.constant 1.000000e+00 : f32
    %369 = vector.broadcast %cst_117 : f32 to vector<8x32xf32>
    %370 = arith.addf %369, %368 : vector<8x32xf32>
    %371 = arith.divf %369, %370 : vector<8x32xf32>
    %372 = vector.extract_strided_slice %359 {offsets = [0, 64], sizes = [8, 32], strides = [1, 1]} : vector<8x128xf32> to vector<8x32xf32>
    %373 = math.tanh %372 : vector<8x32xf32>
    %374 = vector.extract_strided_slice %359 {offsets = [0, 96], sizes = [8, 32], strides = [1, 1]} : vector<8x128xf32> to vector<8x32xf32>
    %375 = arith.negf %374 : vector<8x32xf32>
    %376 = math.exp %375 : vector<8x32xf32>
    %cst_118 = arith.constant 1.000000e+00 : f32
    %377 = vector.broadcast %cst_118 : f32 to vector<8x32xf32>
    %378 = arith.addf %377, %376 : vector<8x32xf32>
    %379 = arith.divf %377, %378 : vector<8x32xf32>
    %380 = arith.mulf %371, %329 : vector<8x32xf32>
    %381 = arith.mulf %365, %373 : vector<8x32xf32>
    %382 = arith.addf %380, %381 : vector<8x32xf32>
    %383 = math.tanh %382 : vector<8x32xf32>
    %384 = arith.mulf %379, %383 : vector<8x32xf32>
    %cst_119 = arith.constant dense<0.000000e+00> : vector<8xf32>
    %385 = vector.multi_reduction <add>, %384, %cst_119 [1] : vector<8x32xf32> to vector<8xf32>
    %386 = vector.shape_cast %385 : vector<8xf32> to vector<8x1xf32>
    %cst_120 = arith.constant 3.200000e+01 : f32
    %387 = vector.broadcast %cst_120 : f32 to vector<8x1xf32>
    %388 = arith.divf %386, %387 : vector<8x1xf32>
    %389 = vector.broadcast %388 : vector<8x1xf32> to vector<8x32xf32>
    %390 = arith.subf %384, %389 : vector<8x32xf32>
    %391 = arith.mulf %390, %390 : vector<8x32xf32>
    %cst_121 = arith.constant dense<0.000000e+00> : vector<8xf32>
    %392 = vector.multi_reduction <add>, %391, %cst_121 [1] : vector<8x32xf32> to vector<8xf32>
    %393 = vector.shape_cast %392 : vector<8xf32> to vector<8x1xf32>
    %cst_122 = arith.constant 3.200000e+01 : f32
    %394 = vector.broadcast %cst_122 : f32 to vector<8x1xf32>
    %395 = arith.divf %393, %394 : vector<8x1xf32>
    %396 = vector.broadcast %388 : vector<8x1xf32> to vector<8x32xf32>
    %397 = arith.subf %384, %396 : vector<8x32xf32>
    %cst_123 = arith.constant 9.99999974E-6 : f32
    %398 = vector.broadcast %cst_123 : f32 to vector<8x1xf32>
    %399 = arith.addf %395, %398 : vector<8x1xf32>
    %400 = math.rsqrt %399 : vector<8x1xf32>
    %401 = vector.broadcast %400 : vector<8x1xf32> to vector<8x32xf32>
    %402 = arith.mulf %397, %401 : vector<8x32xf32>
    %403 = vector.broadcast %7 : vector<1x32xf32> to vector<8x32xf32>
    %404 = arith.mulf %402, %403 : vector<8x32xf32>
    %405 = vector.broadcast %8 : vector<1x32xf32> to vector<8x32xf32>
    %406 = arith.addf %404, %405 : vector<8x32xf32>
    %407 = arith.addf %354, %406 : vector<8x32xf32>
    %c2_i32_124 = arith.constant 2 : i32
    %408 = arith.index_cast %c2_i32_124 : i32 to index
    %c0_125 = arith.constant 0 : index
    %c0_126 = arith.constant 0 : index
    %409 = vector.load %arg14[%408, %c0_125, %c0_126] : memref<8x8x128xf32, #tpu.memory_space<vmem>>, vector<1x8x128xf32>
    %410 = vector.shape_cast %409 : vector<1x8x128xf32> to vector<8x128xf32>
    %cst_127 = arith.constant dense<0.000000e+00> : vector<8x128xf32>
    %411 = tpu.matmul %384, %292, %cst_127 {dimension_numbers = #tpu.dot_dimension_numbers<[1], [0], [0], [1], [0, 0, 1, 1], [], []>} : vector<8x32xf32>, vector<32x128xf32>, vector<8x128xf32> -> vector<8x128xf32>
    %412 = arith.addf %410, %411 : vector<8x128xf32>
    %413 = vector.extract_strided_slice %412 {offsets = [0, 0], sizes = [8, 32], strides = [1, 1]} : vector<8x128xf32> to vector<8x32xf32>
    %414 = arith.negf %413 : vector<8x32xf32>
    %415 = math.exp %414 : vector<8x32xf32>
    %cst_128 = arith.constant 1.000000e+00 : f32
    %416 = vector.broadcast %cst_128 : f32 to vector<8x32xf32>
    %417 = arith.addf %416, %415 : vector<8x32xf32>
    %418 = arith.divf %416, %417 : vector<8x32xf32>
    %419 = vector.extract_strided_slice %412 {offsets = [0, 32], sizes = [8, 32], strides = [1, 1]} : vector<8x128xf32> to vector<8x32xf32>
    %420 = arith.negf %419 : vector<8x32xf32>
    %421 = math.exp %420 : vector<8x32xf32>
    %cst_129 = arith.constant 1.000000e+00 : f32
    %422 = vector.broadcast %cst_129 : f32 to vector<8x32xf32>
    %423 = arith.addf %422, %421 : vector<8x32xf32>
    %424 = arith.divf %422, %423 : vector<8x32xf32>
    %425 = vector.extract_strided_slice %412 {offsets = [0, 64], sizes = [8, 32], strides = [1, 1]} : vector<8x128xf32> to vector<8x32xf32>
    %426 = math.tanh %425 : vector<8x32xf32>
    %427 = vector.extract_strided_slice %412 {offsets = [0, 96], sizes = [8, 32], strides = [1, 1]} : vector<8x128xf32> to vector<8x32xf32>
    %428 = arith.negf %427 : vector<8x32xf32>
    %429 = math.exp %428 : vector<8x32xf32>
    %cst_130 = arith.constant 1.000000e+00 : f32
    %430 = vector.broadcast %cst_130 : f32 to vector<8x32xf32>
    %431 = arith.addf %430, %429 : vector<8x32xf32>
    %432 = arith.divf %430, %431 : vector<8x32xf32>
    %433 = arith.mulf %424, %382 : vector<8x32xf32>
    %434 = arith.mulf %418, %426 : vector<8x32xf32>
    %435 = arith.addf %433, %434 : vector<8x32xf32>
    %436 = math.tanh %435 : vector<8x32xf32>
    %437 = arith.mulf %432, %436 : vector<8x32xf32>
    %cst_131 = arith.constant dense<0.000000e+00> : vector<8xf32>
    %438 = vector.multi_reduction <add>, %437, %cst_131 [1] : vector<8x32xf32> to vector<8xf32>
    %439 = vector.shape_cast %438 : vector<8xf32> to vector<8x1xf32>
    %cst_132 = arith.constant 3.200000e+01 : f32
    %440 = vector.broadcast %cst_132 : f32 to vector<8x1xf32>
    %441 = arith.divf %439, %440 : vector<8x1xf32>
    %442 = vector.broadcast %441 : vector<8x1xf32> to vector<8x32xf32>
    %443 = arith.subf %437, %442 : vector<8x32xf32>
    %444 = arith.mulf %443, %443 : vector<8x32xf32>
    %cst_133 = arith.constant dense<0.000000e+00> : vector<8xf32>
    %445 = vector.multi_reduction <add>, %444, %cst_133 [1] : vector<8x32xf32> to vector<8xf32>
    %446 = vector.shape_cast %445 : vector<8xf32> to vector<8x1xf32>
    %cst_134 = arith.constant 3.200000e+01 : f32
    %447 = vector.broadcast %cst_134 : f32 to vector<8x1xf32>
    %448 = arith.divf %446, %447 : vector<8x1xf32>
    %449 = vector.broadcast %441 : vector<8x1xf32> to vector<8x32xf32>
    %450 = arith.subf %437, %449 : vector<8x32xf32>
    %cst_135 = arith.constant 9.99999974E-6 : f32
    %451 = vector.broadcast %cst_135 : f32 to vector<8x1xf32>
    %452 = arith.addf %448, %451 : vector<8x1xf32>
    %453 = math.rsqrt %452 : vector<8x1xf32>
    %454 = vector.broadcast %453 : vector<8x1xf32> to vector<8x32xf32>
    %455 = arith.mulf %450, %454 : vector<8x32xf32>
    %456 = vector.broadcast %7 : vector<1x32xf32> to vector<8x32xf32>
    %457 = arith.mulf %455, %456 : vector<8x32xf32>
    %458 = vector.broadcast %8 : vector<1x32xf32> to vector<8x32xf32>
    %459 = arith.addf %457, %458 : vector<8x32xf32>
    %460 = arith.addf %407, %459 : vector<8x32xf32>
    %c3_i32_136 = arith.constant 3 : i32
    %461 = arith.index_cast %c3_i32_136 : i32 to index
    %c0_137 = arith.constant 0 : index
    %c0_138 = arith.constant 0 : index
    %462 = vector.load %arg14[%461, %c0_137, %c0_138] : memref<8x8x128xf32, #tpu.memory_space<vmem>>, vector<1x8x128xf32>
    %463 = vector.shape_cast %462 : vector<1x8x128xf32> to vector<8x128xf32>
    %cst_139 = arith.constant dense<0.000000e+00> : vector<8x128xf32>
    %464 = tpu.matmul %437, %292, %cst_139 {dimension_numbers = #tpu.dot_dimension_numbers<[1], [0], [0], [1], [0, 0, 1, 1], [], []>} : vector<8x32xf32>, vector<32x128xf32>, vector<8x128xf32> -> vector<8x128xf32>
    %465 = arith.addf %463, %464 : vector<8x128xf32>
    %466 = vector.extract_strided_slice %465 {offsets = [0, 0], sizes = [8, 32], strides = [1, 1]} : vector<8x128xf32> to vector<8x32xf32>
    %467 = arith.negf %466 : vector<8x32xf32>
    %468 = math.exp %467 : vector<8x32xf32>
    %cst_140 = arith.constant 1.000000e+00 : f32
    %469 = vector.broadcast %cst_140 : f32 to vector<8x32xf32>
    %470 = arith.addf %469, %468 : vector<8x32xf32>
    %471 = arith.divf %469, %470 : vector<8x32xf32>
    %472 = vector.extract_strided_slice %465 {offsets = [0, 32], sizes = [8, 32], strides = [1, 1]} : vector<8x128xf32> to vector<8x32xf32>
    %473 = arith.negf %472 : vector<8x32xf32>
    %474 = math.exp %473 : vector<8x32xf32>
    %cst_141 = arith.constant 1.000000e+00 : f32
    %475 = vector.broadcast %cst_141 : f32 to vector<8x32xf32>
    %476 = arith.addf %475, %474 : vector<8x32xf32>
    %477 = arith.divf %475, %476 : vector<8x32xf32>
    %478 = vector.extract_strided_slice %465 {offsets = [0, 64], sizes = [8, 32], strides = [1, 1]} : vector<8x128xf32> to vector<8x32xf32>
    %479 = math.tanh %478 : vector<8x32xf32>
    %480 = vector.extract_strided_slice %465 {offsets = [0, 96], sizes = [8, 32], strides = [1, 1]} : vector<8x128xf32> to vector<8x32xf32>
    %481 = arith.negf %480 : vector<8x32xf32>
    %482 = math.exp %481 : vector<8x32xf32>
    %cst_142 = arith.constant 1.000000e+00 : f32
    %483 = vector.broadcast %cst_142 : f32 to vector<8x32xf32>
    %484 = arith.addf %483, %482 : vector<8x32xf32>
    %485 = arith.divf %483, %484 : vector<8x32xf32>
    %486 = arith.mulf %477, %435 : vector<8x32xf32>
    %487 = arith.mulf %471, %479 : vector<8x32xf32>
    %488 = arith.addf %486, %487 : vector<8x32xf32>
    %489 = math.tanh %488 : vector<8x32xf32>
    %490 = arith.mulf %485, %489 : vector<8x32xf32>
    %cst_143 = arith.constant dense<0.000000e+00> : vector<8xf32>
    %491 = vector.multi_reduction <add>, %490, %cst_143 [1] : vector<8x32xf32> to vector<8xf32>
    %492 = vector.shape_cast %491 : vector<8xf32> to vector<8x1xf32>
    %cst_144 = arith.constant 3.200000e+01 : f32
    %493 = vector.broadcast %cst_144 : f32 to vector<8x1xf32>
    %494 = arith.divf %492, %493 : vector<8x1xf32>
    %495 = vector.broadcast %494 : vector<8x1xf32> to vector<8x32xf32>
    %496 = arith.subf %490, %495 : vector<8x32xf32>
    %497 = arith.mulf %496, %496 : vector<8x32xf32>
    %cst_145 = arith.constant dense<0.000000e+00> : vector<8xf32>
    %498 = vector.multi_reduction <add>, %497, %cst_145 [1] : vector<8x32xf32> to vector<8xf32>
    %499 = vector.shape_cast %498 : vector<8xf32> to vector<8x1xf32>
    %cst_146 = arith.constant 3.200000e+01 : f32
    %500 = vector.broadcast %cst_146 : f32 to vector<8x1xf32>
    %501 = arith.divf %499, %500 : vector<8x1xf32>
    %502 = vector.broadcast %494 : vector<8x1xf32> to vector<8x32xf32>
    %503 = arith.subf %490, %502 : vector<8x32xf32>
    %cst_147 = arith.constant 9.99999974E-6 : f32
    %504 = vector.broadcast %cst_147 : f32 to vector<8x1xf32>
    %505 = arith.addf %501, %504 : vector<8x1xf32>
    %506 = math.rsqrt %505 : vector<8x1xf32>
    %507 = vector.broadcast %506 : vector<8x1xf32> to vector<8x32xf32>
    %508 = arith.mulf %503, %507 : vector<8x32xf32>
    %509 = vector.broadcast %7 : vector<1x32xf32> to vector<8x32xf32>
    %510 = arith.mulf %508, %509 : vector<8x32xf32>
    %511 = vector.broadcast %8 : vector<1x32xf32> to vector<8x32xf32>
    %512 = arith.addf %510, %511 : vector<8x32xf32>
    %513 = arith.addf %460, %512 : vector<8x32xf32>
    %c4_i32_148 = arith.constant 4 : i32
    %514 = arith.index_cast %c4_i32_148 : i32 to index
    %c0_149 = arith.constant 0 : index
    %c0_150 = arith.constant 0 : index
    %515 = vector.load %arg14[%514, %c0_149, %c0_150] : memref<8x8x128xf32, #tpu.memory_space<vmem>>, vector<1x8x128xf32>
    %516 = vector.shape_cast %515 : vector<1x8x128xf32> to vector<8x128xf32>
    %cst_151 = arith.constant dense<0.000000e+00> : vector<8x128xf32>
    %517 = tpu.matmul %490, %292, %cst_151 {dimension_numbers = #tpu.dot_dimension_numbers<[1], [0], [0], [1], [0, 0, 1, 1], [], []>} : vector<8x32xf32>, vector<32x128xf32>, vector<8x128xf32> -> vector<8x128xf32>
    %518 = arith.addf %516, %517 : vector<8x128xf32>
    %519 = vector.extract_strided_slice %518 {offsets = [0, 0], sizes = [8, 32], strides = [1, 1]} : vector<8x128xf32> to vector<8x32xf32>
    %520 = arith.negf %519 : vector<8x32xf32>
    %521 = math.exp %520 : vector<8x32xf32>
    %cst_152 = arith.constant 1.000000e+00 : f32
    %522 = vector.broadcast %cst_152 : f32 to vector<8x32xf32>
    %523 = arith.addf %522, %521 : vector<8x32xf32>
    %524 = arith.divf %522, %523 : vector<8x32xf32>
    %525 = vector.extract_strided_slice %518 {offsets = [0, 32], sizes = [8, 32], strides = [1, 1]} : vector<8x128xf32> to vector<8x32xf32>
    %526 = arith.negf %525 : vector<8x32xf32>
    %527 = math.exp %526 : vector<8x32xf32>
    %cst_153 = arith.constant 1.000000e+00 : f32
    %528 = vector.broadcast %cst_153 : f32 to vector<8x32xf32>
    %529 = arith.addf %528, %527 : vector<8x32xf32>
    %530 = arith.divf %528, %529 : vector<8x32xf32>
    %531 = vector.extract_strided_slice %518 {offsets = [0, 64], sizes = [8, 32], strides = [1, 1]} : vector<8x128xf32> to vector<8x32xf32>
    %532 = math.tanh %531 : vector<8x32xf32>
    %533 = vector.extract_strided_slice %518 {offsets = [0, 96], sizes = [8, 32], strides = [1, 1]} : vector<8x128xf32> to vector<8x32xf32>
    %534 = arith.negf %533 : vector<8x32xf32>
    %535 = math.exp %534 : vector<8x32xf32>
    %cst_154 = arith.constant 1.000000e+00 : f32
    %536 = vector.broadcast %cst_154 : f32 to vector<8x32xf32>
    %537 = arith.addf %536, %535 : vector<8x32xf32>
    %538 = arith.divf %536, %537 : vector<8x32xf32>
    %539 = arith.mulf %530, %488 : vector<8x32xf32>
    %540 = arith.mulf %524, %532 : vector<8x32xf32>
    %541 = arith.addf %539, %540 : vector<8x32xf32>
    %542 = math.tanh %541 : vector<8x32xf32>
    %543 = arith.mulf %538, %542 : vector<8x32xf32>
    %cst_155 = arith.constant dense<0.000000e+00> : vector<8xf32>
    %544 = vector.multi_reduction <add>, %543, %cst_155 [1] : vector<8x32xf32> to vector<8xf32>
    %545 = vector.shape_cast %544 : vector<8xf32> to vector<8x1xf32>
    %cst_156 = arith.constant 3.200000e+01 : f32
    %546 = vector.broadcast %cst_156 : f32 to vector<8x1xf32>
    %547 = arith.divf %545, %546 : vector<8x1xf32>
    %548 = vector.broadcast %547 : vector<8x1xf32> to vector<8x32xf32>
    %549 = arith.subf %543, %548 : vector<8x32xf32>
    %550 = arith.mulf %549, %549 : vector<8x32xf32>
    %cst_157 = arith.constant dense<0.000000e+00> : vector<8xf32>
    %551 = vector.multi_reduction <add>, %550, %cst_157 [1] : vector<8x32xf32> to vector<8xf32>
    %552 = vector.shape_cast %551 : vector<8xf32> to vector<8x1xf32>
    %cst_158 = arith.constant 3.200000e+01 : f32
    %553 = vector.broadcast %cst_158 : f32 to vector<8x1xf32>
    %554 = arith.divf %552, %553 : vector<8x1xf32>
    %555 = vector.broadcast %547 : vector<8x1xf32> to vector<8x32xf32>
    %556 = arith.subf %543, %555 : vector<8x32xf32>
    %cst_159 = arith.constant 9.99999974E-6 : f32
    %557 = vector.broadcast %cst_159 : f32 to vector<8x1xf32>
    %558 = arith.addf %554, %557 : vector<8x1xf32>
    %559 = math.rsqrt %558 : vector<8x1xf32>
    %560 = vector.broadcast %559 : vector<8x1xf32> to vector<8x32xf32>
    %561 = arith.mulf %556, %560 : vector<8x32xf32>
    %562 = vector.broadcast %7 : vector<1x32xf32> to vector<8x32xf32>
    %563 = arith.mulf %561, %562 : vector<8x32xf32>
    %564 = vector.broadcast %8 : vector<1x32xf32> to vector<8x32xf32>
    %565 = arith.addf %563, %564 : vector<8x32xf32>
    %566 = arith.addf %513, %565 : vector<8x32xf32>
    %c5_i32_160 = arith.constant 5 : i32
    %567 = arith.index_cast %c5_i32_160 : i32 to index
    %c0_161 = arith.constant 0 : index
    %c0_162 = arith.constant 0 : index
    %568 = vector.load %arg14[%567, %c0_161, %c0_162] : memref<8x8x128xf32, #tpu.memory_space<vmem>>, vector<1x8x128xf32>
    %569 = vector.shape_cast %568 : vector<1x8x128xf32> to vector<8x128xf32>
    %cst_163 = arith.constant dense<0.000000e+00> : vector<8x128xf32>
    %570 = tpu.matmul %543, %292, %cst_163 {dimension_numbers = #tpu.dot_dimension_numbers<[1], [0], [0], [1], [0, 0, 1, 1], [], []>} : vector<8x32xf32>, vector<32x128xf32>, vector<8x128xf32> -> vector<8x128xf32>
    %571 = arith.addf %569, %570 : vector<8x128xf32>
    %572 = vector.extract_strided_slice %571 {offsets = [0, 0], sizes = [8, 32], strides = [1, 1]} : vector<8x128xf32> to vector<8x32xf32>
    %573 = arith.negf %572 : vector<8x32xf32>
    %574 = math.exp %573 : vector<8x32xf32>
    %cst_164 = arith.constant 1.000000e+00 : f32
    %575 = vector.broadcast %cst_164 : f32 to vector<8x32xf32>
    %576 = arith.addf %575, %574 : vector<8x32xf32>
    %577 = arith.divf %575, %576 : vector<8x32xf32>
    %578 = vector.extract_strided_slice %571 {offsets = [0, 32], sizes = [8, 32], strides = [1, 1]} : vector<8x128xf32> to vector<8x32xf32>
    %579 = arith.negf %578 : vector<8x32xf32>
    %580 = math.exp %579 : vector<8x32xf32>
    %cst_165 = arith.constant 1.000000e+00 : f32
    %581 = vector.broadcast %cst_165 : f32 to vector<8x32xf32>
    %582 = arith.addf %581, %580 : vector<8x32xf32>
    %583 = arith.divf %581, %582 : vector<8x32xf32>
    %584 = vector.extract_strided_slice %571 {offsets = [0, 64], sizes = [8, 32], strides = [1, 1]} : vector<8x128xf32> to vector<8x32xf32>
    %585 = math.tanh %584 : vector<8x32xf32>
    %586 = vector.extract_strided_slice %571 {offsets = [0, 96], sizes = [8, 32], strides = [1, 1]} : vector<8x128xf32> to vector<8x32xf32>
    %587 = arith.negf %586 : vector<8x32xf32>
    %588 = math.exp %587 : vector<8x32xf32>
    %cst_166 = arith.constant 1.000000e+00 : f32
    %589 = vector.broadcast %cst_166 : f32 to vector<8x32xf32>
    %590 = arith.addf %589, %588 : vector<8x32xf32>
    %591 = arith.divf %589, %590 : vector<8x32xf32>
    %592 = arith.mulf %583, %541 : vector<8x32xf32>
    %593 = arith.mulf %577, %585 : vector<8x32xf32>
    %594 = arith.addf %592, %593 : vector<8x32xf32>
    %595 = math.tanh %594 : vector<8x32xf32>
    %596 = arith.mulf %591, %595 : vector<8x32xf32>
    %cst_167 = arith.constant dense<0.000000e+00> : vector<8xf32>
    %597 = vector.multi_reduction <add>, %596, %cst_167 [1] : vector<8x32xf32> to vector<8xf32>
    %598 = vector.shape_cast %597 : vector<8xf32> to vector<8x1xf32>
    %cst_168 = arith.constant 3.200000e+01 : f32
    %599 = vector.broadcast %cst_168 : f32 to vector<8x1xf32>
    %600 = arith.divf %598, %599 : vector<8x1xf32>
    %601 = vector.broadcast %600 : vector<8x1xf32> to vector<8x32xf32>
    %602 = arith.subf %596, %601 : vector<8x32xf32>
    %603 = arith.mulf %602, %602 : vector<8x32xf32>
    %cst_169 = arith.constant dense<0.000000e+00> : vector<8xf32>
    %604 = vector.multi_reduction <add>, %603, %cst_169 [1] : vector<8x32xf32> to vector<8xf32>
    %605 = vector.shape_cast %604 : vector<8xf32> to vector<8x1xf32>
    %cst_170 = arith.constant 3.200000e+01 : f32
    %606 = vector.broadcast %cst_170 : f32 to vector<8x1xf32>
    %607 = arith.divf %605, %606 : vector<8x1xf32>
    %608 = vector.broadcast %600 : vector<8x1xf32> to vector<8x32xf32>
    %609 = arith.subf %596, %608 : vector<8x32xf32>
    %cst_171 = arith.constant 9.99999974E-6 : f32
    %610 = vector.broadcast %cst_171 : f32 to vector<8x1xf32>
    %611 = arith.addf %607, %610 : vector<8x1xf32>
    %612 = math.rsqrt %611 : vector<8x1xf32>
    %613 = vector.broadcast %612 : vector<8x1xf32> to vector<8x32xf32>
    %614 = arith.mulf %609, %613 : vector<8x32xf32>
    %615 = vector.broadcast %7 : vector<1x32xf32> to vector<8x32xf32>
    %616 = arith.mulf %614, %615 : vector<8x32xf32>
    %617 = vector.broadcast %8 : vector<1x32xf32> to vector<8x32xf32>
    %618 = arith.addf %616, %617 : vector<8x32xf32>
    %619 = arith.addf %566, %618 : vector<8x32xf32>
    %c6_i32_172 = arith.constant 6 : i32
    %620 = arith.index_cast %c6_i32_172 : i32 to index
    %c0_173 = arith.constant 0 : index
    %c0_174 = arith.constant 0 : index
    %621 = vector.load %arg14[%620, %c0_173, %c0_174] : memref<8x8x128xf32, #tpu.memory_space<vmem>>, vector<1x8x128xf32>
    %622 = vector.shape_cast %621 : vector<1x8x128xf32> to vector<8x128xf32>
    %cst_175 = arith.constant dense<0.000000e+00> : vector<8x128xf32>
    %623 = tpu.matmul %596, %292, %cst_175 {dimension_numbers = #tpu.dot_dimension_numbers<[1], [0], [0], [1], [0, 0, 1, 1], [], []>} : vector<8x32xf32>, vector<32x128xf32>, vector<8x128xf32> -> vector<8x128xf32>
    %624 = arith.addf %622, %623 : vector<8x128xf32>
    %625 = vector.extract_strided_slice %624 {offsets = [0, 0], sizes = [8, 32], strides = [1, 1]} : vector<8x128xf32> to vector<8x32xf32>
    %626 = arith.negf %625 : vector<8x32xf32>
    %627 = math.exp %626 : vector<8x32xf32>
    %cst_176 = arith.constant 1.000000e+00 : f32
    %628 = vector.broadcast %cst_176 : f32 to vector<8x32xf32>
    %629 = arith.addf %628, %627 : vector<8x32xf32>
    %630 = arith.divf %628, %629 : vector<8x32xf32>
    %631 = vector.extract_strided_slice %624 {offsets = [0, 32], sizes = [8, 32], strides = [1, 1]} : vector<8x128xf32> to vector<8x32xf32>
    %632 = arith.negf %631 : vector<8x32xf32>
    %633 = math.exp %632 : vector<8x32xf32>
    %cst_177 = arith.constant 1.000000e+00 : f32
    %634 = vector.broadcast %cst_177 : f32 to vector<8x32xf32>
    %635 = arith.addf %634, %633 : vector<8x32xf32>
    %636 = arith.divf %634, %635 : vector<8x32xf32>
    %637 = vector.extract_strided_slice %624 {offsets = [0, 64], sizes = [8, 32], strides = [1, 1]} : vector<8x128xf32> to vector<8x32xf32>
    %638 = math.tanh %637 : vector<8x32xf32>
    %639 = vector.extract_strided_slice %624 {offsets = [0, 96], sizes = [8, 32], strides = [1, 1]} : vector<8x128xf32> to vector<8x32xf32>
    %640 = arith.negf %639 : vector<8x32xf32>
    %641 = math.exp %640 : vector<8x32xf32>
    %cst_178 = arith.constant 1.000000e+00 : f32
    %642 = vector.broadcast %cst_178 : f32 to vector<8x32xf32>
    %643 = arith.addf %642, %641 : vector<8x32xf32>
    %644 = arith.divf %642, %643 : vector<8x32xf32>
    %645 = arith.mulf %636, %594 : vector<8x32xf32>
    %646 = arith.mulf %630, %638 : vector<8x32xf32>
    %647 = arith.addf %645, %646 : vector<8x32xf32>
    %648 = math.tanh %647 : vector<8x32xf32>
    %649 = arith.mulf %644, %648 : vector<8x32xf32>
    %cst_179 = arith.constant dense<0.000000e+00> : vector<8xf32>
    %650 = vector.multi_reduction <add>, %649, %cst_179 [1] : vector<8x32xf32> to vector<8xf32>
    %651 = vector.shape_cast %650 : vector<8xf32> to vector<8x1xf32>
    %cst_180 = arith.constant 3.200000e+01 : f32
    %652 = vector.broadcast %cst_180 : f32 to vector<8x1xf32>
    %653 = arith.divf %651, %652 : vector<8x1xf32>
    %654 = vector.broadcast %653 : vector<8x1xf32> to vector<8x32xf32>
    %655 = arith.subf %649, %654 : vector<8x32xf32>
    %656 = arith.mulf %655, %655 : vector<8x32xf32>
    %cst_181 = arith.constant dense<0.000000e+00> : vector<8xf32>
    %657 = vector.multi_reduction <add>, %656, %cst_181 [1] : vector<8x32xf32> to vector<8xf32>
    %658 = vector.shape_cast %657 : vector<8xf32> to vector<8x1xf32>
    %cst_182 = arith.constant 3.200000e+01 : f32
    %659 = vector.broadcast %cst_182 : f32 to vector<8x1xf32>
    %660 = arith.divf %658, %659 : vector<8x1xf32>
    %661 = vector.broadcast %653 : vector<8x1xf32> to vector<8x32xf32>
    %662 = arith.subf %649, %661 : vector<8x32xf32>
    %cst_183 = arith.constant 9.99999974E-6 : f32
    %663 = vector.broadcast %cst_183 : f32 to vector<8x1xf32>
    %664 = arith.addf %660, %663 : vector<8x1xf32>
    %665 = math.rsqrt %664 : vector<8x1xf32>
    %666 = vector.broadcast %665 : vector<8x1xf32> to vector<8x32xf32>
    %667 = arith.mulf %662, %666 : vector<8x32xf32>
    %668 = vector.broadcast %7 : vector<1x32xf32> to vector<8x32xf32>
    %669 = arith.mulf %667, %668 : vector<8x32xf32>
    %670 = vector.broadcast %8 : vector<1x32xf32> to vector<8x32xf32>
    %671 = arith.addf %669, %670 : vector<8x32xf32>
    %672 = arith.addf %619, %671 : vector<8x32xf32>
    %c7_i32_184 = arith.constant 7 : i32
    %673 = arith.index_cast %c7_i32_184 : i32 to index
    %c0_185 = arith.constant 0 : index
    %c0_186 = arith.constant 0 : index
    %674 = vector.load %arg14[%673, %c0_185, %c0_186] : memref<8x8x128xf32, #tpu.memory_space<vmem>>, vector<1x8x128xf32>
    %675 = vector.shape_cast %674 : vector<1x8x128xf32> to vector<8x128xf32>
    %cst_187 = arith.constant dense<0.000000e+00> : vector<8x128xf32>
    %676 = tpu.matmul %649, %292, %cst_187 {dimension_numbers = #tpu.dot_dimension_numbers<[1], [0], [0], [1], [0, 0, 1, 1], [], []>} : vector<8x32xf32>, vector<32x128xf32>, vector<8x128xf32> -> vector<8x128xf32>
    %677 = arith.addf %675, %676 : vector<8x128xf32>
    %678 = vector.extract_strided_slice %677 {offsets = [0, 0], sizes = [8, 32], strides = [1, 1]} : vector<8x128xf32> to vector<8x32xf32>
    %679 = arith.negf %678 : vector<8x32xf32>
    %680 = math.exp %679 : vector<8x32xf32>
    %cst_188 = arith.constant 1.000000e+00 : f32
    %681 = vector.broadcast %cst_188 : f32 to vector<8x32xf32>
    %682 = arith.addf %681, %680 : vector<8x32xf32>
    %683 = arith.divf %681, %682 : vector<8x32xf32>
    %684 = vector.extract_strided_slice %677 {offsets = [0, 32], sizes = [8, 32], strides = [1, 1]} : vector<8x128xf32> to vector<8x32xf32>
    %685 = arith.negf %684 : vector<8x32xf32>
    %686 = math.exp %685 : vector<8x32xf32>
    %cst_189 = arith.constant 1.000000e+00 : f32
    %687 = vector.broadcast %cst_189 : f32 to vector<8x32xf32>
    %688 = arith.addf %687, %686 : vector<8x32xf32>
    %689 = arith.divf %687, %688 : vector<8x32xf32>
    %690 = vector.extract_strided_slice %677 {offsets = [0, 64], sizes = [8, 32], strides = [1, 1]} : vector<8x128xf32> to vector<8x32xf32>
    %691 = math.tanh %690 : vector<8x32xf32>
    %692 = vector.extract_strided_slice %677 {offsets = [0, 96], sizes = [8, 32], strides = [1, 1]} : vector<8x128xf32> to vector<8x32xf32>
    %693 = arith.negf %692 : vector<8x32xf32>
    %694 = math.exp %693 : vector<8x32xf32>
    %cst_190 = arith.constant 1.000000e+00 : f32
    %695 = vector.broadcast %cst_190 : f32 to vector<8x32xf32>
    %696 = arith.addf %695, %694 : vector<8x32xf32>
    %697 = arith.divf %695, %696 : vector<8x32xf32>
    %698 = arith.mulf %689, %647 : vector<8x32xf32>
    %699 = arith.mulf %683, %691 : vector<8x32xf32>
    %700 = arith.addf %698, %699 : vector<8x32xf32>
    %701 = math.tanh %700 : vector<8x32xf32>
    %702 = arith.mulf %697, %701 : vector<8x32xf32>
    %cst_191 = arith.constant dense<0.000000e+00> : vector<8xf32>
    %703 = vector.multi_reduction <add>, %702, %cst_191 [1] : vector<8x32xf32> to vector<8xf32>
    %704 = vector.shape_cast %703 : vector<8xf32> to vector<8x1xf32>
    %cst_192 = arith.constant 3.200000e+01 : f32
    %705 = vector.broadcast %cst_192 : f32 to vector<8x1xf32>
    %706 = arith.divf %704, %705 : vector<8x1xf32>
    %707 = vector.broadcast %706 : vector<8x1xf32> to vector<8x32xf32>
    %708 = arith.subf %702, %707 : vector<8x32xf32>
    %709 = arith.mulf %708, %708 : vector<8x32xf32>
    %cst_193 = arith.constant dense<0.000000e+00> : vector<8xf32>
    %710 = vector.multi_reduction <add>, %709, %cst_193 [1] : vector<8x32xf32> to vector<8xf32>
    %711 = vector.shape_cast %710 : vector<8xf32> to vector<8x1xf32>
    %cst_194 = arith.constant 3.200000e+01 : f32
    %712 = vector.broadcast %cst_194 : f32 to vector<8x1xf32>
    %713 = arith.divf %711, %712 : vector<8x1xf32>
    %714 = vector.broadcast %706 : vector<8x1xf32> to vector<8x32xf32>
    %715 = arith.subf %702, %714 : vector<8x32xf32>
    %cst_195 = arith.constant 9.99999974E-6 : f32
    %716 = vector.broadcast %cst_195 : f32 to vector<8x1xf32>
    %717 = arith.addf %713, %716 : vector<8x1xf32>
    %718 = math.rsqrt %717 : vector<8x1xf32>
    %719 = vector.broadcast %718 : vector<8x1xf32> to vector<8x32xf32>
    %720 = arith.mulf %715, %719 : vector<8x32xf32>
    %721 = vector.broadcast %7 : vector<1x32xf32> to vector<8x32xf32>
    %722 = arith.mulf %720, %721 : vector<8x32xf32>
    %723 = vector.broadcast %8 : vector<1x32xf32> to vector<8x32xf32>
    %724 = arith.addf %722, %723 : vector<8x32xf32>
    %725 = arith.addf %672, %724 : vector<8x32xf32>
    %c8_i32_196 = arith.constant 8 : i32
    %cst_197 = arith.constant 1.250000e-01 : f32
    %726 = vector.broadcast %cst_197 : f32 to vector<8x32xf32>
    %727 = arith.mulf %725, %726 : vector<8x32xf32>
    %c0_198 = arith.constant 0 : index
    %c0_199 = arith.constant 0 : index
    %728 = vector.load %arg11[%c0_198, %c0_199] : memref<32x16xf32, #tpu.memory_space<vmem>>, vector<32x16xf32>
    %cst_200 = arith.constant dense<0.000000e+00> : vector<8x16xf32>
    %729 = tpu.matmul %727, %728, %cst_200 {dimension_numbers = #tpu.dot_dimension_numbers<[1], [0], [0], [1], [0, 0, 1, 1], [], []>} : vector<8x32xf32>, vector<32x16xf32>, vector<8x16xf32> -> vector<8x16xf32>
    %c0_201 = arith.constant 0 : index
    %c0_202 = arith.constant 0 : index
    %730 = vector.load %arg12[%c0_201, %c0_202] : memref<1x16xf32, #tpu.memory_space<vmem>>, vector<1x16xf32>
    %731 = vector.broadcast %730 : vector<1x16xf32> to vector<8x16xf32>
    %732 = arith.addf %729, %731 : vector<8x16xf32>
    %c0_203 = arith.constant 0 : index
    %c0_204 = arith.constant 0 : index
    %733 = vector.load %arg13[%c0_203, %c0_204] : memref<8x16xf32, #tpu.memory_space<vmem>>, vector<8x16xf32>
    tpu.vector_store %arg13[%c0_203, %c0_204], %732 {strides = array<i32>} : memref<8x16xf32, #tpu.memory_space<vmem>>, vector<8x16xf32>,
    return
  }
}

</mosaic_0001>

<llo_original>
// kernel: tpu_custom_call.1
$region0: #{tpu_custom_call.1}
  #allocation0 [shape = 'u32[]', space=smem, size = 0x4, offset = 0x4, fixed_abs, tag = 'smem constant byte address 0x4 - core index']
  #allocation1 [shape = 'u32[72,128]{1,0:T(1,128)}', space=vmem, size = 0x9000, scoped, tag = 'internal scratch']
  #allocation2 [shape = 'f32[8,8,128]{2,1,0:T(8,128)}', space=vmem, size = 0x8000, scoped, tag = 'scratch operand']
  #allocation3 [shape = 'f32[8,8,32]{2,1,0:T(8,128)}', space=vmem, size = 0x8000, scoped, tag = 'scratch operand']
  %s0 = inlined_call_operand.hbm [shape: f32[8,8,16], index: 0, kind: input, shape index: {}]
  %s1 = inlined_call_operand.vmem [shape: f32[16,16], index: 1, kind: input, shape index: {}]
  %s2 = inlined_call_operand.vmem [shape: f32[1,16], index: 2, kind: input, shape index: {}]
  %s3 = inlined_call_operand.hbm [shape: f32[16,128], index: 3, kind: input, shape index: {}]
  %s4 = inlined_call_operand.vmem [shape: f32[32,128], index: 4, kind: input, shape index: {}]
  %s5 = inlined_call_operand.vmem [shape: f32[1,128], index: 5, kind: input, shape index: {}]
  %s6 = inlined_call_operand.hbm [shape: f32[32,128], index: 6, kind: input, shape index: {}]
  %s7 = inlined_call_operand.hbm [shape: f32[32,128], index: 7, kind: input, shape index: {}]
  %s8 = inlined_call_operand.vmem [shape: f32[1,128], index: 8, kind: input, shape index: {}]
  %s9 = inlined_call_operand.vmem [shape: f32[1,32], index: 9, kind: input, shape index: {}]
  %s10 = inlined_call_operand.vmem [shape: f32[1,32], index: 10, kind: input, shape index: {}]
  %s11 = inlined_call_operand.vmem [shape: f32[32,16], index: 11, kind: input, shape index: {}]
  %s12 = inlined_call_operand.vmem [shape: f32[1,16], index: 12, kind: input, shape index: {}]
  %s13 = inlined_call_operand.hbm [shape: f32[8,16], index: 13, kind: output, shape index: {}]
  %s14 = sld [smem:[#allocation0]]
  $region78: #{tpu_custom_call.1} parent=0
    _
  %s16 = ssub.s32 1, %s14
  %s17 = scalar_select 0, %s16, %s14
  $region1: #{tpu_custom_call.1} parent=0
    #allocation4 [shape = 'u8[32768]{0}', space=vmem, size = 0x8000, scoped, tag = 'input window, operand 0, single buffered']
    #allocation5 [shape = 's32[1]{0}', space=sflag, size = 0x4, scoped, tag = 'scoped memory for tpu_custom_call.1']
    #allocation6 [shape = 's32[1]{0}', space=sflag, size = 0x4, scoped, tag = 'scoped memory for tpu_custom_call.1']
    #allocation7 [shape = 'u8[8192]{0}', space=vmem, size = 0x2000, scoped, tag = 'input window, operand 3, single buffered']
    #allocation8 [shape = 's32[1]{0}', space=sflag, size = 0x4, scoped, tag = 'scoped memory for tpu_custom_call.1']
    #allocation9 [shape = 'u8[16384]{0}', space=vmem, size = 0x4000, scoped, tag = 'input window, operand 6, single buffered']
    #allocation10 [shape = 'u8[16384]{0}', space=vmem, size = 0x4000, scoped, tag = 'input window, operand 7, single buffered']
    #allocation11 [shape = 's32[1]{0}', space=sflag, size = 0x4, scoped, tag = 'scoped memory for tpu_custom_call.1']
    #allocation12 [shape = 'u8[4096]{0}', space=vmem, size = 0x1000, scoped, tag = 'output window, operand 0, single buffered']
    %18 = vsyncpa [#allocation5], 0
    %19 = vsyncpa [#allocation8], 0
    %20 = vsyncpa [#allocation11], 0
    %21 = vsyncpa [#allocation6], 0
    // Predicated region
    $region2: #{tpu_custom_call.1} parent=1 // pred_check
      _
    $region3: #{tpu_custom_call.1} parent=1 // pred_check_branch
      %23 = sbr.rel (0) target = $region5
    $region4: #{tpu_custom_call.1} parent=1 // pred_region
      %25 = vsyncadd [#allocation5], 0
      %s26 = sshll.u32 %s0, 4
      %s27 = int_to_ptr.hbm [resolvable:$true] %s26
      %s28 = sshll.u32 [#allocation4], 4
      %s29 = int_to_ptr.vmem [resolvable:$true] %s28
      %34 = dma.hbm_to_vmem [thread:$0]  %s27, 1024, %s29, [#allocation5], 128, 128, 8
    $region5: #{tpu_custom_call.1} parent=1 // pred_fallthru
      _
    // Predicated region
    $region6: #{tpu_custom_call.1} parent=1 // pred_check
      _
    $region7: #{tpu_custom_call.1} parent=1 // pred_check_branch
      %36 = sbr.rel (0) target = $region9
    $region8: #{tpu_custom_call.1} parent=1 // pred_region
      _
    $region9: #{tpu_custom_call.1} parent=1 // pred_fallthru
      _
    // Predicated region
    $region10: #{tpu_custom_call.1} parent=1 // pred_check
      _
    $region11: #{tpu_custom_call.1} parent=1 // pred_check_branch
      %38 = sbr.rel (0) target = $region13
    $region12: #{tpu_custom_call.1} parent=1 // pred_region
      _
    $region13: #{tpu_custom_call.1} parent=1 // pred_fallthru
      _
    // Predicated region
    $region14: #{tpu_custom_call.1} parent=1 // pred_check
      _
    $region15: #{tpu_custom_call.1} parent=1 // pred_check_branch
      %40 = sbr.rel (0) target = $region17
    $region16: #{tpu_custom_call.1} parent=1 // pred_region
      %42 = vsyncadd [#allocation8], 0
      %s43 = sshll.u32 %s3, 4
      %s44 = int_to_ptr.hbm [resolvable:$true] %s43
      %s45 = sshll.u32 [#allocation7], 4
      %s46 = int_to_ptr.vmem [resolvable:$true] %s45
      %51 = dma.hbm_to_vmem [thread:$0]  %s44, 256, %s46, [#allocation8], 128, 128, 8
    $region17: #{tpu_custom_call.1} parent=1 // pred_fallthru
      _
    // Predicated region
    $region18: #{tpu_custom_call.1} parent=1 // pred_check
      _
    $region19: #{tpu_custom_call.1} parent=1 // pred_check_branch
      %53 = sbr.rel (0) target = $region21
    $region20: #{tpu_custom_call.1} parent=1 // pred_region
      _
    $region21: #{tpu_custom_call.1} parent=1 // pred_fallthru
      _
    // Predicated region
    $region22: #{tpu_custom_call.1} parent=1 // pred_check
      _
    $region23: #{tpu_custom_call.1} parent=1 // pred_check_branch
      %55 = sbr.rel (0) target = $region25
    $region24: #{tpu_custom_call.1} parent=1 // pred_region
      _
    $region25: #{tpu_custom_call.1} parent=1 // pred_fallthru
      _
    // Predicated region
    $region26: #{tpu_custom_call.1} parent=1 // pred_check
      _
    $region27: #{tpu_custom_call.1} parent=1 // pred_check_branch
      %57 = sbr.rel (0) target = $region29
    $region28: #{tpu_custom_call.1} parent=1 // pred_region
      %59 = vsyncadd [#allocation8], 0
      %s60 = sshll.u32 %s6, 4
      %s61 = int_to_ptr.hbm [resolvable:$true] %s60
      %s62 = sshll.u32 [#allocation9], 4
      %s63 = int_to_ptr.vmem [resolvable:$true] %s62
      %68 = dma.hbm_to_vmem [thread:$0]  %s61, 512, %s63, [#allocation8], 128, 128, 8
    $region29: #{tpu_custom_call.1} parent=1 // pred_fallthru
      _
    // Predicated region
    $region30: #{tpu_custom_call.1} parent=1 // pred_check
      _
    $region31: #{tpu_custom_call.1} parent=1 // pred_check_branch
      %70 = sbr.rel (0) target = $region33
    $region32: #{tpu_custom_call.1} parent=1 // pred_region
      %72 = vsyncadd [#allocation11], 0
      %s73 = sshll.u32 %s7, 4
      %s74 = int_to_ptr.hbm [resolvable:$true] %s73
      %s75 = sshll.u32 [#allocation10], 4
      %s76 = int_to_ptr.vmem [resolvable:$true] %s75
      %81 = dma.hbm_to_vmem [thread:$0]  %s74, 512, %s76, [#allocation11], 128, 128, 8
    $region33: #{tpu_custom_call.1} parent=1 // pred_fallthru
      _
    // Predicated region
    $region34: #{tpu_custom_call.1} parent=1 // pred_check
      _
    $region35: #{tpu_custom_call.1} parent=1 // pred_check_branch
      %83 = sbr.rel (0) target = $region37
    $region36: #{tpu_custom_call.1} parent=1 // pred_region
      _
    $region37: #{tpu_custom_call.1} parent=1 // pred_fallthru
      _
    // Predicated region
    $region38: #{tpu_custom_call.1} parent=1 // pred_check
      _
    $region39: #{tpu_custom_call.1} parent=1 // pred_check_branch
      %85 = sbr.rel (0) target = $region41
    $region40: #{tpu_custom_call.1} parent=1 // pred_region
      _
    $region41: #{tpu_custom_call.1} parent=1 // pred_fallthru
      _
    // Predicated region
    $region42: #{tpu_custom_call.1} parent=1 // pred_check
      _
    $region43: #{tpu_custom_call.1} parent=1 // pred_check_branch
      %87 = sbr.rel (0) target = $region45
    $region44: #{tpu_custom_call.1} parent=1 // pred_region
      _
    $region45: #{tpu_custom_call.1} parent=1 // pred_fallthru
      _
    // Predicated region
    $region46: #{tpu_custom_call.1} parent=1 // pred_check
      _
    $region47: #{tpu_custom_call.1} parent=1 // pred_check_branch
      %89 = sbr.rel (0) target = $region49
    $region48: #{tpu_custom_call.1} parent=1 // pred_region
      _
    $region49: #{tpu_custom_call.1} parent=1 // pred_fallthru
      _
    // Predicated region
    $region50: #{tpu_custom_call.1} parent=1 // pred_check
      _
    $region51: #{tpu_custom_call.1} parent=1 // pred_check_branch
      %91 = sbr.rel (0) target = $region53
    $region52: #{tpu_custom_call.1} parent=1 // pred_region
      _
    $region53: #{tpu_custom_call.1} parent=1 // pred_fallthru
      _
    // Predicated region
    $region54: #{tpu_custom_call.1} parent=1 // pred_check
      _
    $region55: #{tpu_custom_call.1} parent=1 // pred_check_branch
      %93 = sbr.rel (0) target = $region57
    $region56: #{tpu_custom_call.1} parent=1 // pred_region
      %95 = dma.done [#allocation5], 1024
    $region57: #{tpu_custom_call.1} parent=1 // pred_fallthru
      _
    // Predicated region
    $region58: #{tpu_custom_call.1} parent=1 // pred_check
      _
    $region59: #{tpu_custom_call.1} parent=1 // pred_check_branch
      %97 = sbr.rel (0) target = $region61
    $region60: #{tpu_custom_call.1} parent=1 // pred_region
      %99 = dma.done [#allocation8], 256
    $region61: #{tpu_custom_call.1} parent=1 // pred_fallthru
      _
    // Predicated region
    $region62: #{tpu_custom_call.1} parent=1 // pred_check
      _
    $region63: #{tpu_custom_call.1} parent=1 // pred_check_branch
      %101 = sbr.rel (0) target = $region65
    $region64: #{tpu_custom_call.1} parent=1 // pred_region
      %103 = dma.done [#allocation8], 512
    $region65: #{tpu_custom_call.1} parent=1 // pred_fallthru
      _
    // Predicated region
    $region66: #{tpu_custom_call.1} parent=1 // pred_check
      _
    $region67: #{tpu_custom_call.1} parent=1 // pred_check_branch
      %105 = sbr.rel (0) target = $region69
    $region68: #{tpu_custom_call.1} parent=1 // pred_region
      %107 = dma.done [#allocation11], 512
    $region69: #{tpu_custom_call.1} parent=1 // pred_fallthru
      _
    %v108 = vld [vmem:[#allocation4] sm:$0xff]
    %v109 = vld [vmem:[#allocation4 + $0x8] sm:$0xff]
    %v110 = vld [vmem:[#allocation4 + $0x10] sm:$0xff]
    %v111 = vld [vmem:[#allocation4 + $0x18] sm:$0xff]
    %v112 = vld [vmem:[#allocation4 + $0x20] sm:$0xff]
    %v113 = vld [vmem:[#allocation4 + $0x28] sm:$0xff]
    %v114 = vld [vmem:[#allocation4 + $0x30] sm:$0xff]
    %v115 = vld [vmem:[#allocation4 + $0x38] sm:$0xff]
    %v116 = vld [vmem:[%s1] sm:$0xff]
    %v117 = vld [vmem:[%s1 + $0x8] sm:$0xff]
    %v118 = vld [vmem:[%s2] sm:$0x1]
    %v120 = vperm.slane %v118, 0
    %vm122 = vcmask 130048
    %v124 = vsel %vm122, %v108, 0
    %v127 = vsel %vm122, %v109, 0
    %v130 = vsel %vm122, %v110, 0
    %v133 = vsel %vm122, %v111, 0
    %v136 = vsel %vm122, %v112, 0
    %v139 = vsel %vm122, %v113, 0
    %v142 = vsel %vm122, %v114, 0
    %v145 = vsel %vm122, %v115, 0
    %147 = vmatpush.msra.mxu0 0.0
    %148 = vmatpush.msra.mxu0 0.0
    %149 = vmatpush.msra.mxu0 0.0
    %150 = vmatpush.msra.mxu0 0.0
    %151 = vmatpush.msra.mxu0 0.0
    %152 = vmatpush.msra.mxu0 0.0
    %153 = vmatpush.msra.mxu0 0.0
    %154 = vmatpush.msra.mxu0 0.0
    %155 = vmatpush.msra.mxu0 0.0
    %156 = vmatpush.msra.mxu0 0.0
    %157 = vmatpush.msra.mxu0 0.0
    %158 = vmatpush.msra.mxu0 0.0
    %159 = vmatpush.msra.mxu0 0.0
    %160 = vmatpush.msra.mxu0 0.0
    %161 = vmatpush.msra.mxu0 %v117
    %162 = vmatpush.msra.mxu0 %v116
    %163 = vmatmul.f32.gmra.mxu0 %v124
    %v164 = vpop.f32.mrf.mxu0
    %v165 = vadd.f32 %v120, %v164
    %166 = vmatmul.f32.gmra.mxu0 %v127
    %v167 = vpop.f32.mrf.mxu0
    %v168 = vadd.f32 %v120, %v167
    %169 = vmatmul.f32.gmra.mxu0 %v130
    %v170 = vpop.f32.mrf.mxu0
    %v171 = vadd.f32 %v120, %v170
    %172 = vmatmul.f32.gmra.mxu0 %v133
    %v173 = vpop.f32.mrf.mxu0
    %v174 = vadd.f32 %v120, %v173
    %175 = vmatmul.f32.gmra.mxu0 %v136
    %v176 = vpop.f32.mrf.mxu0
    %v177 = vadd.f32 %v120, %v176
    %178 = vmatmul.f32.gmra.mxu0 %v139
    %v179 = vpop.f32.mrf.mxu0
    %v180 = vadd.f32 %v120, %v179
    %181 = vmatmul.f32.gmra.mxu0 %v142
    %v182 = vpop.f32.mrf.mxu0
    %v183 = vadd.f32 %v120, %v182
    %184 = vmatmul.f32.gmra.mxu0 %v145
    %v185 = vpop.f32.mrf.mxu0
    %v186 = vadd.f32 %v120, %v185
    %187 = vdwg.mxu0
    %v188 = vld [vmem:[%s9] sm:$0x1]
    %v189 = vld [vmem:[%s10] sm:$0x1]
    %v190 = vld [vmem:[#allocation7] sm:$0xff]
    %v191 = vld [vmem:[#allocation7 + $0x8] sm:$0xff]
    %v192 = vld [vmem:[%s4] sm:$0xff]
    %v193 = vld [vmem:[%s4 + $0x8] sm:$0xff]
    %v194 = vld [vmem:[%s4 + $0x10] sm:$0xff]
    %v195 = vld [vmem:[%s4 + $0x18] sm:$0xff]
    %v196 = vld [vmem:[%s5] sm:$0x1]
    %v198 = vperm.slane %v196, 0
    %v201 = vsel %vm122, %v165, 0
    %v204 = vsel %vm122, %v168, 0
    %v207 = vsel %vm122, %v171, 0
    %v210 = vsel %vm122, %v174, 0
    %v213 = vsel %vm122, %v177, 0
    %v216 = vsel %vm122, %v180, 0
    %v219 = vsel %vm122, %v183, 0
    %v222 = vsel %vm122, %v186, 0
    %224 = vmatpush.msra.mxu0 0.0
    %225 = vmatpush.msra.mxu0 0.0
    %226 = vmatpush.msra.mxu0 0.0
    %227 = vmatpush.msra.mxu0 0.0
    %228 = vmatpush.msra.mxu0 0.0
    %229 = vmatpush.msra.mxu0 0.0
    %230 = vmatpush.msra.mxu0 0.0
    %231 = vmatpush.msra.mxu0 0.0
    %232 = vmatpush.msra.mxu0 0.0
    %233 = vmatpush.msra.mxu0 0.0
    %234 = vmatpush.msra.mxu0 0.0
    %235 = vmatpush.msra.mxu0 0.0
    %236 = vmatpush.msra.mxu0 0.0
    %237 = vmatpush.msra.mxu0 0.0
    %238 = vmatpush.msra.mxu0 %v191
    %239 = vmatpush.msra.mxu0 %v190
    %240 = vmatmul.f32.gmra.mxu0 %v201
    %v241 = vpop.f32.mrf.mxu0
    %v242 = vadd.f32 %v198, %v241
    %243 = vmatmul.f32.gmra.mxu0 %v204
    %v244 = vpop.f32.mrf.mxu0
    %v245 = vadd.f32 %v198, %v244
    %246 = vmatmul.f32.gmra.mxu0 %v207
    %v247 = vpop.f32.mrf.mxu0
    %v248 = vadd.f32 %v198, %v247
    %249 = vmatmul.f32.gmra.mxu0 %v210
    %v250 = vpop.f32.mrf.mxu0
    %v251 = vadd.f32 %v198, %v250
    %252 = vmatmul.f32.gmra.mxu0 %v213
    %v253 = vpop.f32.mrf.mxu0
    %v254 = vadd.f32 %v198, %v253
    %255 = vmatmul.f32.gmra.mxu0 %v216
    %v256 = vpop.f32.mrf.mxu0
    %v257 = vadd.f32 %v198, %v256
    %258 = vmatmul.f32.gmra.mxu0 %v219
    %v259 = vpop.f32.mrf.mxu0
    %v260 = vadd.f32 %v198, %v259
    %261 = vmatmul.f32.gmra.mxu0 %v222
    %v262 = vpop.f32.mrf.mxu0
    %v263 = vadd.f32 %v198, %v262
    %264 = vdwg.mxu0
    %265 = vst [vmem:[#allocation2] sm:$0xff] %v242
    %266 = vst [vmem:[#allocation2 + $0x8] sm:$0xff] %v245
    %267 = vst [vmem:[#allocation2 + $0x10] sm:$0xff] %v248
    %268 = vst [vmem:[#allocation2 + $0x18] sm:$0xff] %v251
    %269 = vst [vmem:[#allocation2 + $0x20] sm:$0xff] %v254
    %270 = vst [vmem:[#allocation2 + $0x28] sm:$0xff] %v257
    %271 = vst [vmem:[#allocation2 + $0x30] sm:$0xff] %v260
    %272 = vst [vmem:[#allocation2 + $0x38] sm:$0xff] %v263
    %v273 = vld [vmem:[#allocation2] sm:$0xff]
    %vm274 = vcmask 261120
    %v276 = vsel %vm274, 0.0, 0
    %278 = vmatpush.msra.mxu0 0.0
    %279 = vmatpush.msra.mxu0 0.0
    %280 = vmatpush.msra.mxu0 0.0
    %281 = vmatpush.msra.mxu0 0.0
    %282 = vmatpush.msra.mxu0 0.0
    %283 = vmatpush.msra.mxu0 0.0
    %284 = vmatpush.msra.mxu0 0.0
    %285 = vmatpush.msra.mxu0 0.0
    %286 = vmatpush.msra.mxu0 0.0
    %287 = vmatpush.msra.mxu0 0.0
    %288 = vmatpush.msra.mxu0 0.0
    %289 = vmatpush.msra.mxu0 0.0
    %290 = vmatpush.msra.mxu0 %v195
    %291 = vmatpush.msra.mxu0 %v194
    %292 = vmatpush.msra.mxu0 %v193
    %293 = vmatpush.msra.mxu0 %v192
    %294 = vmatmul.f32.gmra.mxu0 %v276
    %v295 = vpop.f32.mrf.mxu0
    %v296 = vadd.f32 0.0, %v295
    %297 = vdwg.mxu0
    %v298 = vadd.f32 %v273, %v296
    %v299 = vxor.u32 %v298, 2147483648
    %v300 = vmul.f32 %v299, 1.442695
    %v301 = vpow.pop %v300
    %v302 = vadd.f32 %v301, 1.0
    %v303 = vrcp.pop %v302
    %v304 = vmul.f32 %v302, %v303
    %v305 = vsub.f32 1.0, %v304
    %v306 = vmul.f32 %v303, %v305
    %v307 = vadd.f32 %v303, %v306
    %vm308 = vweird.f32 %v302
    %vm309 = vweird.f32 %v303
    %vm310 = vmor %vm308, %vm309
    %v311 = vsel %vm310, %v303, %v307
    %v312 = vand.u32 2147483647, %v302
    %vm313 = vcmp.eq.f32.partialorder %v312, 8.507059e+37
    %v314 = vand.u32 %v302, 2147483648
    %v315 = vor.u32 1.1754944e-38, %v314
    %v316 = vsel %vm313, %v315, %v311
    %v317 = vmul.f32 1.0, %v316
    %v318 = vtanh.pop %v298
    %v319 = vmul.f32 %v317, 0.0
    %321 = vrot.lane.b32.xlu0 %v318, 64
    %v322 = vpop.permute.xlu0 %321
    %v324 = vmul.f32 %v317, %v322
    %326 = vrot.lane.b32.xlu0 %v324, 32
    %v327 = vpop.permute.xlu0 %326
    %v329 = vadd.f32 %v319, %v327
    %v330 = vtanh.pop %v329
    %332 = vrot.lane.b32.xlu0 %v330, 64
    %v333 = vpop.permute.xlu0 %332
    %v335 = vmul.f32 %v317, %v333
    %337 = vrot.lane.b32.xlu0 %v335, 32
    %v338 = vpop.permute.xlu0 %337
    %340 = vst.msk [vmem:[#allocation3] sm:$0xff] %vm274, %v338
    %s341 = scalar_lea.vmem [#allocation2], 8
    %v342 = vld [vmem:[%s341] sm:$0xff]
    %v343 = vsel %vm274, %v338, 0
    %345 = vmatpush.msra.mxu0 0.0
    %346 = vmatpush.msra.mxu0 0.0
    %347 = vmatpush.msra.mxu0 0.0
    %348 = vmatpush.msra.mxu0 0.0
    %349 = vmatpush.msra.mxu0 0.0
    %350 = vmatpush.msra.mxu0 0.0
    %351 = vmatpush.msra.mxu0 0.0
    %352 = vmatpush.msra.mxu0 0.0
    %353 = vmatpush.msra.mxu0 0.0
    %354 = vmatpush.msra.mxu0 0.0
    %355 = vmatpush.msra.mxu0 0.0
    %356 = vmatpush.msra.mxu0 0.0
    %357 = vmatpush.msra.mxu0 %v195
    %358 = vmatpush.msra.mxu0 %v194
    %359 = vmatpush.msra.mxu0 %v193
    %360 = vmatpush.msra.mxu0 %v192
    %361 = vmatmul.f32.gmra.mxu0 %v343
    %v362 = vpop.f32.mrf.mxu0
    %v363 = vadd.f32 0.0, %v362
    %364 = vdwg.mxu0
    %v365 = vadd.f32 %v342, %v363
    %v366 = vxor.u32 %v365, 2147483648
    %v367 = vmul.f32 %v366, 1.442695
    %v368 = vpow.pop %v367
    %v369 = vadd.f32 %v368, 1.0
    %v370 = vrcp.pop %v369
    %v371 = vmul.f32 %v369, %v370
    %v372 = vsub.f32 1.0, %v371
    %v373 = vmul.f32 %v370, %v372
    %v374 = vadd.f32 %v370, %v373
    %vm375 = vweird.f32 %v369
    %vm376 = vweird.f32 %v370
    %vm377 = vmor %vm375, %vm376
    %v378 = vsel %vm377, %v370, %v374
    %v379 = vand.u32 2147483647, %v369
    %vm380 = vcmp.eq.f32.partialorder %v379, 8.507059e+37
    %v381 = vand.u32 %v369, 2147483648
    %v382 = vor.u32 1.1754944e-38, %v381
    %v383 = vsel %vm380, %v382, %v378
    %v384 = vmul.f32 1.0, %v383
    %v385 = vtanh.pop %v365
    %v386 = vmul.f32 %v384, %v329
    %388 = vrot.lane.b32.xlu0 %v385, 64
    %v389 = vpop.permute.xlu0 %388
    %v391 = vmul.f32 %v384, %v389
    %393 = vrot.lane.b32.xlu0 %v391, 32
    %v394 = vpop.permute.xlu0 %393
    %v396 = vadd.f32 %v386, %v394
    %v397 = vtanh.pop %v396
    %399 = vrot.lane.b32.xlu0 %v397, 64
    %v400 = vpop.permute.xlu0 %399
    %v402 = vmul.f32 %v384, %v400
    %404 = vrot.lane.b32.xlu0 %v402, 32
    %v405 = vpop.permute.xlu0 %404
    %s407 = scalar_lea.vmem [#allocation3], 8
    %408 = vst.msk [vmem:[%s407] sm:$0xff] %vm274, %v405
    %s409 = scalar_lea.vmem [#allocation2], 16
    %v410 = vld [vmem:[%s409] sm:$0xff]
    %v411 = vsel %vm274, %v405, 0
    %413 = vmatpush.msra.mxu0 0.0
    %414 = vmatpush.msra.mxu0 0.0
    %415 = vmatpush.msra.mxu0 0.0
    %416 = vmatpush.msra.mxu0 0.0
    %417 = vmatpush.msra.mxu0 0.0
    %418 = vmatpush.msra.mxu0 0.0
    %419 = vmatpush.msra.mxu0 0.0
    %420 = vmatpush.msra.mxu0 0.0
    %421 = vmatpush.msra.mxu0 0.0
    %422 = vmatpush.msra.mxu0 0.0
    %423 = vmatpush.msra.mxu0 0.0
    %424 = vmatpush.msra.mxu0 0.0
    %425 = vmatpush.msra.mxu0 %v195
    %426 = vmatpush.msra.mxu0 %v194
    %427 = vmatpush.msra.mxu0 %v193
    %428 = vmatpush.msra.mxu0 %v192
    %429 = vmatmul.f32.gmra.mxu0 %v411
    %v430 = vpop.f32.mrf.mxu0
    %v431 = vadd.f32 0.0, %v430
    %432 = vdwg.mxu0
    %v433 = vadd.f32 %v410, %v431
    %v434 = vxor.u32 %v433, 2147483648
    %v435 = vmul.f32 %v434, 1.442695
    %v436 = vpow.pop %v435
    %v437 = vadd.f32 %v436, 1.0
    %v438 = vrcp.pop %v437
    %v439 = vmul.f32 %v437, %v438
    %v440 = vsub.f32 1.0, %v439
    %v441 = vmul.f32 %v438, %v440
    %v442 = vadd.f32 %v438, %v441
    %vm443 = vweird.f32 %v437
    %vm444 = vweird.f32 %v438
    %vm445 = vmor %vm443, %vm444
    %v446 = vsel %vm445, %v438, %v442
    %v447 = vand.u32 2147483647, %v437
    %vm448 = vcmp.eq.f32.partialorder %v447, 8.507059e+37
    %v449 = vand.u32 %v437, 2147483648
    %v450 = vor.u32 1.1754944e-38, %v449
    %v451 = vsel %vm448, %v450, %v446
    %v452 = vmul.f32 1.0, %v451
    %v453 = vtanh.pop %v433
    %v454 = vmul.f32 %v452, %v396
    %456 = vrot.lane.b32.xlu0 %v453, 64
    %v457 = vpop.permute.xlu0 %456
    %v459 = vmul.f32 %v452, %v457
    %461 = vrot.lane.b32.xlu0 %v459, 32
    %v462 = vpop.permute.xlu0 %461
    %v464 = vadd.f32 %v454, %v462
    %v465 = vtanh.pop %v464
    %467 = vrot.lane.b32.xlu0 %v465, 64
    %v468 = vpop.permute.xlu0 %467
    %v470 = vmul.f32 %v452, %v468
    %472 = vrot.lane.b32.xlu0 %v470, 32
    %v473 = vpop.permute.xlu0 %472
    %s475 = scalar_lea.vmem [#allocation3], 16
    %476 = vst.msk [vmem:[%s475] sm:$0xff] %vm274, %v473
    %s477 = scalar_lea.vmem [#allocation2], 24
    %v478 = vld [vmem:[%s477] sm:$0xff]
    %v479 = vsel %vm274, %v473, 0
    %481 = vmatpush.msra.mxu0 0.0
    %482 = vmatpush.msra.mxu0 0.0
    %483 = vmatpush.msra.mxu0 0.0
    %484 = vmatpush.msra.mxu0 0.0
    %485 = vmatpush.msra.mxu0 0.0
    %486 = vmatpush.msra.mxu0 0.0
    %487 = vmatpush.msra.mxu0 0.0
    %488 = vmatpush.msra.mxu0 0.0
    %489 = vmatpush.msra.mxu0 0.0
    %490 = vmatpush.msra.mxu0 0.0
    %491 = vmatpush.msra.mxu0 0.0
    %492 = vmatpush.msra.mxu0 0.0
    %493 = vmatpush.msra.mxu0 %v195
    %494 = vmatpush.msra.mxu0 %v194
    %495 = vmatpush.msra.mxu0 %v193
    %496 = vmatpush.msra.mxu0 %v192
    %497 = vmatmul.f32.gmra.mxu0 %v479
    %v498 = vpop.f32.mrf.mxu0
    %v499 = vadd.f32 0.0, %v498
    %500 = vdwg.mxu0
    %v501 = vadd.f32 %v478, %v499
    %v502 = vxor.u32 %v501, 2147483648
    %v503 = vmul.f32 %v502, 1.442695
    %v504 = vpow.pop %v503
    %v505 = vadd.f32 %v504, 1.0
    %v506 = vrcp.pop %v505
    %v507 = vmul.f32 %v505, %v506
    %v508 = vsub.f32 1.0, %v507
    %v509 = vmul.f32 %v506, %v508
    %v510 = vadd.f32 %v506, %v509
    %vm511 = vweird.f32 %v505
    %vm512 = vweird.f32 %v506
    %vm513 = vmor %vm511, %vm512
    %v514 = vsel %vm513, %v506, %v510
    %v515 = vand.u32 2147483647, %v505
    %vm516 = vcmp.eq.f32.partialorder %v515, 8.507059e+37
    %v517 = vand.u32 %v505, 2147483648
    %v518 = vor.u32 1.1754944e-38, %v517
    %v519 = vsel %vm516, %v518, %v514
    %v520 = vmul.f32 1.0, %v519
    %v521 = vtanh.pop %v501
    %v522 = vmul.f32 %v520, %v464
    %524 = vrot.lane.b32.xlu0 %v521, 64
    %v525 = vpop.permute.xlu0 %524
    %v527 = vmul.f32 %v520, %v525
    %529 = vrot.lane.b32.xlu0 %v527, 32
    %v530 = vpop.permute.xlu0 %529
    %v532 = vadd.f32 %v522, %v530
    %v533 = vtanh.pop %v532
    %535 = vrot.lane.b32.xlu0 %v533, 64
    %v536 = vpop.permute.xlu0 %535
    %v538 = vmul.f32 %v520, %v536
    %540 = vrot.lane.b32.xlu0 %v538, 32
    %v541 = vpop.permute.xlu0 %540
    %s543 = scalar_lea.vmem [#allocation3], 24
    %544 = vst.msk [vmem:[%s543] sm:$0xff] %vm274, %v541
    %s545 = scalar_lea.vmem [#allocation2], 32
    %v546 = vld [vmem:[%s545] sm:$0xff]
    %v547 = vsel %vm274, %v541, 0
    %549 = vmatpush.msra.mxu0 0.0
    %550 = vmatpush.msra.mxu0 0.0
    %551 = vmatpush.msra.mxu0 0.0
    %552 = vmatpush.msra.mxu0 0.0
    %553 = vmatpush.msra.mxu0 0.0
    %554 = vmatpush.msra.mxu0 0.0
    %555 = vmatpush.msra.mxu0 0.0
    %556 = vmatpush.msra.mxu0 0.0
    %557 = vmatpush.msra.mxu0 0.0
    %558 = vmatpush.msra.mxu0 0.0
    %559 = vmatpush.msra.mxu0 0.0
    %560 = vmatpush.msra.mxu0 0.0
    %561 = vmatpush.msra.mxu0 %v195
    %562 = vmatpush.msra.mxu0 %v194
    %563 = vmatpush.msra.mxu0 %v193
    %564 = vmatpush.msra.mxu0 %v192
    %565 = vmatmul.f32.gmra.mxu0 %v547
    %v566 = vpop.f32.mrf.mxu0
    %v567 = vadd.f32 0.0, %v566
    %568 = vdwg.mxu0
    %v569 = vadd.f32 %v546, %v567
    %v570 = vxor.u32 %v569, 2147483648
    %v571 = vmul.f32 %v570, 1.442695
    %v572 = vpow.pop %v571
    %v573 = vadd.f32 %v572, 1.0
    %v574 = vrcp.pop %v573
    %v575 = vmul.f32 %v573, %v574
    %v576 = vsub.f32 1.0, %v575
    %v577 = vmul.f32 %v574, %v576
    %v578 = vadd.f32 %v574, %v577
    %vm579 = vweird.f32 %v573
    %vm580 = vweird.f32 %v574
    %vm581 = vmor %vm579, %vm580
    %v582 = vsel %vm581, %v574, %v578
    %v583 = vand.u32 2147483647, %v573
    %vm584 = vcmp.eq.f32.partialorder %v583, 8.507059e+37
    %v585 = vand.u32 %v573, 2147483648
    %v586 = vor.u32 1.1754944e-38, %v585
    %v587 = vsel %vm584, %v586, %v582
    %v588 = vmul.f32 1.0, %v587
    %v589 = vtanh.pop %v569
    %v590 = vmul.f32 %v588, %v532
    %592 = vrot.lane.b32.xlu0 %v589, 64
    %v593 = vpop.permute.xlu0 %592
    %v595 = vmul.f32 %v588, %v593
    %597 = vrot.lane.b32.xlu0 %v595, 32
    %v598 = vpop.permute.xlu0 %597
    %v600 = vadd.f32 %v590, %v598
    %v601 = vtanh.pop %v600
    %603 = vrot.lane.b32.xlu0 %v601, 64
    %v604 = vpop.permute.xlu0 %603
    %v606 = vmul.f32 %v588, %v604
    %608 = vrot.lane.b32.xlu0 %v606, 32
    %v609 = vpop.permute.xlu0 %608
    %s611 = scalar_lea.vmem [#allocation3], 32
    %612 = vst.msk [vmem:[%s611] sm:$0xff] %vm274, %v609
    %s613 = scalar_lea.vmem [#allocation2], 40
    %v614 = vld [vmem:[%s613] sm:$0xff]
    %v615 = vsel %vm274, %v609, 0
    %617 = vmatpush.msra.mxu0 0.0
    %618 = vmatpush.msra.mxu0 0.0
    %619 = vmatpush.msra.mxu0 0.0
    %620 = vmatpush.msra.mxu0 0.0
    %621 = vmatpush.msra.mxu0 0.0
    %622 = vmatpush.msra.mxu0 0.0
    %623 = vmatpush.msra.mxu0 0.0
    %624 = vmatpush.msra.mxu0 0.0
    %625 = vmatpush.msra.mxu0 0.0
    %626 = vmatpush.msra.mxu0 0.0
    %627 = vmatpush.msra.mxu0 0.0
    %628 = vmatpush.msra.mxu0 0.0
    %629 = vmatpush.msra.mxu0 %v195
    %630 = vmatpush.msra.mxu0 %v194
    %631 = vmatpush.msra.mxu0 %v193
    %632 = vmatpush.msra.mxu0 %v192
    %633 = vmatmul.f32.gmra.mxu0 %v615
    %v634 = vpop.f32.mrf.mxu0
    %v635 = vadd.f32 0.0, %v634
    %636 = vdwg.mxu0
    %v637 = vadd.f32 %v614, %v635
    %v638 = vxor.u32 %v637, 2147483648
    %v639 = vmul.f32 %v638, 1.442695
    %v640 = vpow.pop %v639
    %v641 = vadd.f32 %v640, 1.0
    %v642 = vrcp.pop %v641
    %v643 = vmul.f32 %v641, %v642
    %v644 = vsub.f32 1.0, %v643
    %v645 = vmul.f32 %v642, %v644
    %v646 = vadd.f32 %v642, %v645
    %vm647 = vweird.f32 %v641
    %vm648 = vweird.f32 %v642
    %vm649 = vmor %vm647, %vm648
    %v650 = vsel %vm649, %v642, %v646
    %v651 = vand.u32 2147483647, %v641
    %vm652 = vcmp.eq.f32.partialorder %v651, 8.507059e+37
    %v653 = vand.u32 %v641, 2147483648
    %v654 = vor.u32 1.1754944e-38, %v653
    %v655 = vsel %vm652, %v654, %v650
    %v656 = vmul.f32 1.0, %v655
    %v657 = vtanh.pop %v637
    %v658 = vmul.f32 %v656, %v600
    %660 = vrot.lane.b32.xlu0 %v657, 64
    %v661 = vpop.permute.xlu0 %660
    %v663 = vmul.f32 %v656, %v661
    %665 = vrot.lane.b32.xlu0 %v663, 32
    %v666 = vpop.permute.xlu0 %665
    %v668 = vadd.f32 %v658, %v666
    %v669 = vtanh.pop %v668
    %671 = vrot.lane.b32.xlu0 %v669, 64
    %v672 = vpop.permute.xlu0 %671
    %v674 = vmul.f32 %v656, %v672
    %676 = vrot.lane.b32.xlu0 %v674, 32
    %v677 = vpop.permute.xlu0 %676
    %s679 = scalar_lea.vmem [#allocation3], 40
    %680 = vst.msk [vmem:[%s679] sm:$0xff] %vm274, %v677
    %s681 = scalar_lea.vmem [#allocation2], 48
    %v682 = vld [vmem:[%s681] sm:$0xff]
    %v683 = vsel %vm274, %v677, 0
    %685 = vmatpush.msra.mxu0 0.0
    %686 = vmatpush.msra.mxu0 0.0
    %687 = vmatpush.msra.mxu0 0.0
    %688 = vmatpush.msra.mxu0 0.0
    %689 = vmatpush.msra.mxu0 0.0
    %690 = vmatpush.msra.mxu0 0.0
    %691 = vmatpush.msra.mxu0 0.0
    %692 = vmatpush.msra.mxu0 0.0
    %693 = vmatpush.msra.mxu0 0.0
    %694 = vmatpush.msra.mxu0 0.0
    %695 = vmatpush.msra.mxu0 0.0
    %696 = vmatpush.msra.mxu0 0.0
    %697 = vmatpush.msra.mxu0 %v195
    %698 = vmatpush.msra.mxu0 %v194
    %699 = vmatpush.msra.mxu0 %v193
    %700 = vmatpush.msra.mxu0 %v192
    %701 = vmatmul.f32.gmra.mxu0 %v683
    %v702 = vpop.f32.mrf.mxu0
    %v703 = vadd.f32 0.0, %v702
    %704 = vdwg.mxu0
    %v705 = vadd.f32 %v682, %v703
    %v706 = vxor.u32 %v705, 2147483648
    %v707 = vmul.f32 %v706, 1.442695
    %v708 = vpow.pop %v707
    %v709 = vadd.f32 %v708, 1.0
    %v710 = vrcp.pop %v709
    %v711 = vmul.f32 %v709, %v710
    %v712 = vsub.f32 1.0, %v711
    %v713 = vmul.f32 %v710, %v712
    %v714 = vadd.f32 %v710, %v713
    %vm715 = vweird.f32 %v709
    %vm716 = vweird.f32 %v710
    %vm717 = vmor %vm715, %vm716
    %v718 = vsel %vm717, %v710, %v714
    %v719 = vand.u32 2147483647, %v709
    %vm720 = vcmp.eq.f32.partialorder %v719, 8.507059e+37
    %v721 = vand.u32 %v709, 2147483648
    %v722 = vor.u32 1.1754944e-38, %v721
    %v723 = vsel %vm720, %v722, %v718
    %v724 = vmul.f32 1.0, %v723
    %v725 = vtanh.pop %v705
    %v726 = vmul.f32 %v724, %v668
    %728 = vrot.lane.b32.xlu0 %v725, 64
    %v729 = vpop.permute.xlu0 %728
    %v731 = vmul.f32 %v724, %v729
    %733 = vrot.lane.b32.xlu0 %v731, 32
    %v734 = vpop.permute.xlu0 %733
    %v736 = vadd.f32 %v726, %v734
    %v737 = vtanh.pop %v736
    %739 = vrot.lane.b32.xlu0 %v737, 64
    %v740 = vpop.permute.xlu0 %739
    %v742 = vmul.f32 %v724, %v740
    %744 = vrot.lane.b32.xlu0 %v742, 32
    %v745 = vpop.permute.xlu0 %744
    %s747 = scalar_lea.vmem [#allocation3], 48
    %748 = vst.msk [vmem:[%s747] sm:$0xff] %vm274, %v745
    %s749 = scalar_lea.vmem [#allocation2], 56
    %v750 = vld [vmem:[%s749] sm:$0xff]
    %v751 = vsel %vm274, %v745, 0
    %753 = vmatpush.msra.mxu0 0.0
    %754 = vmatpush.msra.mxu0 0.0
    %755 = vmatpush.msra.mxu0 0.0
    %756 = vmatpush.msra.mxu0 0.0
    %757 = vmatpush.msra.mxu0 0.0
    %758 = vmatpush.msra.mxu0 0.0
    %759 = vmatpush.msra.mxu0 0.0
    %760 = vmatpush.msra.mxu0 0.0
    %761 = vmatpush.msra.mxu0 0.0
    %762 = vmatpush.msra.mxu0 0.0
    %763 = vmatpush.msra.mxu0 0.0
    %764 = vmatpush.msra.mxu0 0.0
    %765 = vmatpush.msra.mxu0 %v195
    %766 = vmatpush.msra.mxu0 %v194
    %767 = vmatpush.msra.mxu0 %v193
    %768 = vmatpush.msra.mxu0 %v192
    %769 = vmatmul.f32.gmra.mxu0 %v751
    %v770 = vpop.f32.mrf.mxu0
    %v771 = vadd.f32 0.0, %v770
    %772 = vdwg.mxu0
    %v773 = vadd.f32 %v750, %v771
    %v774 = vxor.u32 %v773, 2147483648
    %v775 = vmul.f32 %v774, 1.442695
    %v776 = vpow.pop %v775
    %v777 = vadd.f32 %v776, 1.0
    %v778 = vrcp.pop %v777
    %v779 = vmul.f32 %v777, %v778
    %v780 = vsub.f32 1.0, %v779
    %v781 = vmul.f32 %v778, %v780
    %v782 = vadd.f32 %v778, %v781
    %vm783 = vweird.f32 %v777
    %vm784 = vweird.f32 %v778
    %vm785 = vmor %vm783, %vm784
    %v786 = vsel %vm785, %v778, %v782
    %v787 = vand.u32 2147483647, %v777
    %vm788 = vcmp.eq.f32.partialorder %v787, 8.507059e+37
    %v789 = vand.u32 %v777, 2147483648
    %v790 = vor.u32 1.1754944e-38, %v789
    %v791 = vsel %vm788, %v790, %v786
    %v792 = vmul.f32 1.0, %v791
    %v793 = vtanh.pop %v773
    %v794 = vmul.f32 %v792, %v736
    %796 = vrot.lane.b32.xlu0 %v793, 64
    %v797 = vpop.permute.xlu0 %796
    %v799 = vmul.f32 %v792, %v797
    %801 = vrot.lane.b32.xlu0 %v799, 32
    %v802 = vpop.permute.xlu0 %801
    %v804 = vadd.f32 %v794, %v802
    %v805 = vtanh.pop %v804
    %807 = vrot.lane.b32.xlu0 %v805, 64
    %v808 = vpop.permute.xlu0 %807
    %v810 = vmul.f32 %v792, %v808
    %812 = vrot.lane.b32.xlu0 %v810, 32
    %v813 = vpop.permute.xlu0 %812
    %s815 = scalar_lea.vmem [#allocation3], 56
    %816 = vst.msk [vmem:[%s815] sm:$0xff] %vm274, %v813
    %v817 = vld [vmem:[#allocation9] sm:$0xff]
    %v818 = vld [vmem:[#allocation9 + $0x8] sm:$0xff]
    %v819 = vld [vmem:[#allocation9 + $0x10] sm:$0xff]
    %v820 = vld [vmem:[#allocation9 + $0x18] sm:$0xff]
    %v821 = vld [vmem:[#allocation10] sm:$0xff]
    %v822 = vld [vmem:[#allocation10 + $0x8] sm:$0xff]
    %v823 = vld [vmem:[#allocation10 + $0x10] sm:$0xff]
    %v824 = vld [vmem:[#allocation10 + $0x18] sm:$0xff]
    %v825 = vld [vmem:[%s8] sm:$0x1]
    %v826 = vld [vmem:[#allocation3] sm:$0xff]
    %v827 = vld [vmem:[#allocation3 + $0x8] sm:$0xff]
    %v828 = vld [vmem:[#allocation3 + $0x10] sm:$0xff]
    %v829 = vld [vmem:[#allocation3 + $0x18] sm:$0xff]
    %v830 = vld [vmem:[#allocation3 + $0x20] sm:$0xff]
    %v831 = vld [vmem:[#allocation3 + $0x28] sm:$0xff]
    %v832 = vld [vmem:[#allocation3 + $0x30] sm:$0xff]
    %v833 = vld [vmem:[#allocation3 + $0x38] sm:$0xff]
    %v835 = vperm.slane %v825, 0
    %v838 = vsel %vm274, %v826, 0
    %v841 = vsel %vm274, %v827, 0
    %v844 = vsel %vm274, %v828, 0
    %v847 = vsel %vm274, %v829, 0
    %v850 = vsel %vm274, %v830, 0
    %v853 = vsel %vm274, %v831, 0
    %v856 = vsel %vm274, %v832, 0
    %v859 = vsel %vm274, %v833, 0
    %861 = vmatpush.msra.mxu0 0.0
    %862 = vmatpush.msra.mxu0 0.0
    %863 = vmatpush.msra.mxu0 0.0
    %864 = vmatpush.msra.mxu0 0.0
    %865 = vmatpush.msra.mxu0 0.0
    %866 = vmatpush.msra.mxu0 0.0
    %867 = vmatpush.msra.mxu0 0.0
    %868 = vmatpush.msra.mxu0 0.0
    %869 = vmatpush.msra.mxu0 0.0
    %870 = vmatpush.msra.mxu0 0.0
    %871 = vmatpush.msra.mxu0 0.0
    %872 = vmatpush.msra.mxu0 0.0
    %873 = vmatpush.msra.mxu0 %v820
    %874 = vmatpush.msra.mxu0 %v819
    %875 = vmatpush.msra.mxu0 %v818
    %876 = vmatpush.msra.mxu0 %v817
    %877 = vmatmul.f32.gmra.mxu0 %v838
    %v878 = vpop.f32.mrf.mxu0
    %v879 = vadd.f32 %v835, %v878
    %880 = vmatmul.f32.gmra.mxu0 %v841
    %v881 = vpop.f32.mrf.mxu0
    %v882 = vadd.f32 %v835, %v881
    %883 = vmatmul.f32.gmra.mxu0 %v844
    %v884 = vpop.f32.mrf.mxu0
    %v885 = vadd.f32 %v835, %v884
    %886 = vmatmul.f32.gmra.mxu0 %v847
    %v887 = vpop.f32.mrf.mxu0
    %v888 = vadd.f32 %v835, %v887
    %889 = vmatmul.f32.gmra.mxu0 %v850
    %v890 = vpop.f32.mrf.mxu0
    %v891 = vadd.f32 %v835, %v890
    %892 = vmatmul.f32.gmra.mxu0 %v853
    %v893 = vpop.f32.mrf.mxu0
    %v894 = vadd.f32 %v835, %v893
    %895 = vmatmul.f32.gmra.mxu0 %v856
    %v896 = vpop.f32.mrf.mxu0
    %v897 = vadd.f32 %v835, %v896
    %898 = vmatmul.f32.gmra.mxu0 %v859
    %v899 = vpop.f32.mrf.mxu0
    %v900 = vadd.f32 %v835, %v899
    %901 = vdwg.mxu0
    %902 = vst [vmem:[#allocation2] sm:$0xff] %v879
    %903 = vst [vmem:[#allocation2 + $0x8] sm:$0xff] %v882
    %904 = vst [vmem:[#allocation2 + $0x10] sm:$0xff] %v885
    %905 = vst [vmem:[#allocation2 + $0x18] sm:$0xff] %v888
    %906 = vst [vmem:[#allocation2 + $0x20] sm:$0xff] %v891
    %907 = vst [vmem:[#allocation2 + $0x28] sm:$0xff] %v894
    %908 = vst [vmem:[#allocation2 + $0x30] sm:$0xff] %v897
    %909 = vst [vmem:[#allocation2 + $0x38] sm:$0xff] %v900
    %v910 = vld [vmem:[#allocation2] sm:$0xff]
    %911 = vmatpush.msra.mxu0 0.0
    %912 = vmatpush.msra.mxu0 0.0
    %913 = vmatpush.msra.mxu0 0.0
    %914 = vmatpush.msra.mxu0 0.0
    %915 = vmatpush.msra.mxu0 0.0
    %916 = vmatpush.msra.mxu0 0.0
    %917 = vmatpush.msra.mxu0 0.0
    %918 = vmatpush.msra.mxu0 0.0
    %919 = vmatpush.msra.mxu0 0.0
    %920 = vmatpush.msra.mxu0 0.0
    %921 = vmatpush.msra.mxu0 0.0
    %922 = vmatpush.msra.mxu0 0.0
    %923 = vmatpush.msra.mxu0 %v824
    %924 = vmatpush.msra.mxu0 %v823
    %925 = vmatpush.msra.mxu0 %v822
    %926 = vmatpush.msra.mxu0 %v821
    %927 = vmatmul.f32.gmra.mxu0 %v276
    %v928 = vpop.f32.mrf.mxu0
    %v929 = vadd.f32 0.0, %v928
    %930 = vdwg.mxu0
    %v931 = vadd.f32 %v910, %v929
    %v932 = vxor.u32 %v931, 2147483648
    %v933 = vmul.f32 %v932, 1.442695
    %v934 = vpow.pop %v933
    %v935 = vadd.f32 %v934, 1.0
    %v936 = vrcp.pop %v935
    %v937 = vmul.f32 %v935, %v936
    %v938 = vsub.f32 1.0, %v937
    %v939 = vmul.f32 %v936, %v938
    %v940 = vadd.f32 %v936, %v939
    %vm941 = vweird.f32 %v935
    %vm942 = vweird.f32 %v936
    %vm943 = vmor %vm941, %vm942
    %v944 = vsel %vm943, %v936, %v940
    %v945 = vand.u32 2147483647, %v935
    %vm946 = vcmp.eq.f32.partialorder %v945, 8.507059e+37
    %v947 = vand.u32 %v935, 2147483648
    %v948 = vor.u32 1.1754944e-38, %v947
    %v949 = vsel %vm946, %v948, %v944
    %v950 = vmul.f32 1.0, %v949
    %v951 = vtanh.pop %v931
    %v952 = vmul.f32 %v950, 0.0
    %954 = vrot.lane.b32.xlu0 %v951, 64
    %v955 = vpop.permute.xlu0 %954
    %v957 = vmul.f32 %v950, %v955
    %959 = vrot.lane.b32.xlu0 %v957, 32
    %v960 = vpop.permute.xlu0 %959
    %v962 = vadd.f32 %v952, %v960
    %v963 = vtanh.pop %v962
    %965 = vrot.lane.b32.xlu0 %v963, 64
    %v966 = vpop.permute.xlu0 %965
    %v968 = vmul.f32 %v950, %v966
    %970 = vrot.lane.b32.xlu0 %v968, 32
    %v971 = vpop.permute.xlu0 %970
    %v973 = vsel %vm274, %v971, 0.0
    %974 = vadd.xlane.f32.xlu0 %v973
    %v975 = vpop.xlane.xlu0 %974
    %v976 = vrcp.pop 32.0
    %v977 = vmul.f32 32.0, %v976
    %v978 = vsub.f32 1.0, %v977
    %v979 = vmul.f32 %v976, %v978
    %v980 = vadd.f32 %v976, %v979
    %vm981 = vweird.f32 %v976
    %v982 = vsel %vm981, %v976, %v980
    %v983 = vmul.f32 %v975, %v982
    %v984 = vsub.f32 %v968, %v983
    %v985 = vmul.f32 %v984, %v984
    %987 = vrot.lane.b32.xlu0 %v985, 32
    %v988 = vpop.permute.xlu0 %987
    %v990 = vsel %vm274, %v988, 0.0
    %991 = vadd.xlane.f32.xlu0 %v990
    %v992 = vpop.xlane.xlu0 %991
    %v993 = vmul.f32 %v992, %v982
    %v994 = vadd.f32 %v993, 1e-05
    %v995 = vrsqrt.pop %v994
    %v996 = vmul.f32 %v995, %v994
    %v997 = vmul.f32 %v996, %v995
    %v998 = vmul.f32 0.5, %v997
    %v999 = vsub.f32 1.5, %v998
    %v1000 = vmul.f32 %v995, %v999
    %vm1001 = vweird.f32 %v994
    %vm1002 = vweird.f32 %v995
    %vm1003 = vmor %vm1001, %vm1002
    %v1004 = vsel %vm1003, %v995, %v1000
    %v1005 = vmul.f32 %v984, %v1004
    %v1007 = vperm.slane %v188, 0
    %1008 = vrot.lane.b32.xlu0 %v1007, 96
    %v1009 = vpop.permute.xlu0 %1008
    %v1011 = vmul.f32 %v1005, %v1009
    %v1013 = vperm.slane %v189, 0
    %1014 = vrot.lane.b32.xlu0 %v1013, 96
    %v1015 = vpop.permute.xlu0 %1014
    %v1017 = vadd.f32 %v1011, %v1015
    %v1018 = vadd.f32 %v1017, 0.0
    %v1019 = vld [vmem:[%s341] sm:$0xff]
    %v1020 = vsel %vm274, %v971, 0
    %1022 = vmatpush.msra.mxu0 0.0
    %1023 = vmatpush.msra.mxu0 0.0
    %1024 = vmatpush.msra.mxu0 0.0
    %1025 = vmatpush.msra.mxu0 0.0
    %1026 = vmatpush.msra.mxu0 0.0
    %1027 = vmatpush.msra.mxu0 0.0
    %1028 = vmatpush.msra.mxu0 0.0
    %1029 = vmatpush.msra.mxu0 0.0
    %1030 = vmatpush.msra.mxu0 0.0
    %1031 = vmatpush.msra.mxu0 0.0
    %1032 = vmatpush.msra.mxu0 0.0
    %1033 = vmatpush.msra.mxu0 0.0
    %1034 = vmatpush.msra.mxu0 %v824
    %1035 = vmatpush.msra.mxu0 %v823
    %1036 = vmatpush.msra.mxu0 %v822
    %1037 = vmatpush.msra.mxu0 %v821
    %1038 = vmatmul.f32.gmra.mxu0 %v1020
    %v1039 = vpop.f32.mrf.mxu0
    %v1040 = vadd.f32 0.0, %v1039
    %1041 = vdwg.mxu0
    %v1042 = vadd.f32 %v1019, %v1040
    %v1043 = vxor.u32 %v1042, 2147483648
    %v1044 = vmul.f32 %v1043, 1.442695
    %v1045 = vpow.pop %v1044
    %v1046 = vadd.f32 %v1045, 1.0
    %v1047 = vrcp.pop %v1046
    %v1048 = vmul.f32 %v1046, %v1047
    %v1049 = vsub.f32 1.0, %v1048
    %v1050 = vmul.f32 %v1047, %v1049
    %v1051 = vadd.f32 %v1047, %v1050
    %vm1052 = vweird.f32 %v1046
    %vm1053 = vweird.f32 %v1047
    %vm1054 = vmor %vm1052, %vm1053
    %v1055 = vsel %vm1054, %v1047, %v1051
    %v1056 = vand.u32 2147483647, %v1046
    %vm1057 = vcmp.eq.f32.partialorder %v1056, 8.507059e+37
    %v1058 = vand.u32 %v1046, 2147483648
    %v1059 = vor.u32 1.1754944e-38, %v1058
    %v1060 = vsel %vm1057, %v1059, %v1055
    %v1061 = vmul.f32 1.0, %v1060
    %v1062 = vtanh.pop %v1042
    %v1063 = vmul.f32 %v1061, %v962
    %1065 = vrot.lane.b32.xlu0 %v1062, 64
    %v1066 = vpop.permute.xlu0 %1065
    %v1068 = vmul.f32 %v1061, %v1066
    %1070 = vrot.lane.b32.xlu0 %v1068, 32
    %v1071 = vpop.permute.xlu0 %1070
    %v1073 = vadd.f32 %v1063, %v1071
    %v1074 = vtanh.pop %v1073
    %1076 = vrot.lane.b32.xlu0 %v1074, 64
    %v1077 = vpop.permute.xlu0 %1076
    %v1079 = vmul.f32 %v1061, %v1077
    %1081 = vrot.lane.b32.xlu0 %v1079, 32
    %v1082 = vpop.permute.xlu0 %1081
    %v1084 = vsel %vm274, %v1082, 0.0
    %1085 = vadd.xlane.f32.xlu0 %v1084
    %v1086 = vpop.xlane.xlu0 %1085
    %v1087 = vmul.f32 %v1086, %v982
    %v1088 = vsub.f32 %v1079, %v1087
    %v1089 = vmul.f32 %v1088, %v1088
    %1091 = vrot.lane.b32.xlu0 %v1089, 32
    %v1092 = vpop.permute.xlu0 %1091
    %v1094 = vsel %vm274, %v1092, 0.0
    %1095 = vadd.xlane.f32.xlu0 %v1094
    %v1096 = vpop.xlane.xlu0 %1095
    %v1097 = vmul.f32 %v1096, %v982
    %v1098 = vadd.f32 %v1097, 1e-05
    %v1099 = vrsqrt.pop %v1098
    %v1100 = vmul.f32 %v1099, %v1098
    %v1101 = vmul.f32 %v1100, %v1099
    %v1102 = vmul.f32 0.5, %v1101
    %v1103 = vsub.f32 1.5, %v1102
    %v1104 = vmul.f32 %v1099, %v1103
    %vm1105 = vweird.f32 %v1098
    %vm1106 = vweird.f32 %v1099
    %vm1107 = vmor %vm1105, %vm1106
    %v1108 = vsel %vm1107, %v1099, %v1104
    %v1109 = vmul.f32 %v1088, %v1108
    %v1110 = vmul.f32 %v1109, %v1009
    %v1111 = vadd.f32 %v1110, %v1015
    %v1112 = vadd.f32 %v1018, %v1111
    %v1113 = vld [vmem:[%s409] sm:$0xff]
    %v1114 = vsel %vm274, %v1082, 0
    %1116 = vmatpush.msra.mxu0 0.0
    %1117 = vmatpush.msra.mxu0 0.0
    %1118 = vmatpush.msra.mxu0 0.0
    %1119 = vmatpush.msra.mxu0 0.0
    %1120 = vmatpush.msra.mxu0 0.0
    %1121 = vmatpush.msra.mxu0 0.0
    %1122 = vmatpush.msra.mxu0 0.0
    %1123 = vmatpush.msra.mxu0 0.0
    %1124 = vmatpush.msra.mxu0 0.0
    %1125 = vmatpush.msra.mxu0 0.0
    %1126 = vmatpush.msra.mxu0 0.0
    %1127 = vmatpush.msra.mxu0 0.0
    %1128 = vmatpush.msra.mxu0 %v824
    %1129 = vmatpush.msra.mxu0 %v823
    %1130 = vmatpush.msra.mxu0 %v822
    %1131 = vmatpush.msra.mxu0 %v821
    %1132 = vmatmul.f32.gmra.mxu0 %v1114
    %v1133 = vpop.f32.mrf.mxu0
    %v1134 = vadd.f32 0.0, %v1133
    %1135 = vdwg.mxu0
    %v1136 = vadd.f32 %v1113, %v1134
    %v1137 = vxor.u32 %v1136, 2147483648
    %v1138 = vmul.f32 %v1137, 1.442695
    %v1139 = vpow.pop %v1138
    %v1140 = vadd.f32 %v1139, 1.0
    %v1141 = vrcp.pop %v1140
    %v1142 = vmul.f32 %v1140, %v1141
    %v1143 = vsub.f32 1.0, %v1142
    %v1144 = vmul.f32 %v1141, %v1143
    %v1145 = vadd.f32 %v1141, %v1144
    %vm1146 = vweird.f32 %v1140
    %vm1147 = vweird.f32 %v1141
    %vm1148 = vmor %vm1146, %vm1147
    %v1149 = vsel %vm1148, %v1141, %v1145
    %v1150 = vand.u32 2147483647, %v1140
    %vm1151 = vcmp.eq.f32.partialorder %v1150, 8.507059e+37
    %v1152 = vand.u32 %v1140, 2147483648
    %v1153 = vor.u32 1.1754944e-38, %v1152
    %v1154 = vsel %vm1151, %v1153, %v1149
    %v1155 = vmul.f32 1.0, %v1154
    %v1156 = vtanh.pop %v1136
    %v1157 = vmul.f32 %v1155, %v1073
    %1159 = vrot.lane.b32.xlu0 %v1156, 64
    %v1160 = vpop.permute.xlu0 %1159
    %v1162 = vmul.f32 %v1155, %v1160
    %1164 = vrot.lane.b32.xlu0 %v1162, 32
    %v1165 = vpop.permute.xlu0 %1164
    %v1167 = vadd.f32 %v1157, %v1165
    %v1168 = vtanh.pop %v1167
    %1170 = vrot.lane.b32.xlu0 %v1168, 64
    %v1171 = vpop.permute.xlu0 %1170
    %v1173 = vmul.f32 %v1155, %v1171
    %1175 = vrot.lane.b32.xlu0 %v1173, 32
    %v1176 = vpop.permute.xlu0 %1175
    %v1178 = vsel %vm274, %v1176, 0.0
    %1179 = vadd.xlane.f32.xlu0 %v1178
    %v1180 = vpop.xlane.xlu0 %1179
    %v1181 = vmul.f32 %v1180, %v982
    %v1182 = vsub.f32 %v1173, %v1181
    %v1183 = vmul.f32 %v1182, %v1182
    %1185 = vrot.lane.b32.xlu0 %v1183, 32
    %v1186 = vpop.permute.xlu0 %1185
    %v1188 = vsel %vm274, %v1186, 0.0
    %1189 = vadd.xlane.f32.xlu0 %v1188
    %v1190 = vpop.xlane.xlu0 %1189
    %v1191 = vmul.f32 %v1190, %v982
    %v1192 = vadd.f32 %v1191, 1e-05
    %v1193 = vrsqrt.pop %v1192
    %v1194 = vmul.f32 %v1193, %v1192
    %v1195 = vmul.f32 %v1194, %v1193
    %v1196 = vmul.f32 0.5, %v1195
    %v1197 = vsub.f32 1.5, %v1196
    %v1198 = vmul.f32 %v1193, %v1197
    %vm1199 = vweird.f32 %v1192
    %vm1200 = vweird.f32 %v1193
    %vm1201 = vmor %vm1199, %vm1200
    %v1202 = vsel %vm1201, %v1193, %v1198
    %v1203 = vmul.f32 %v1182, %v1202
    %v1204 = vmul.f32 %v1203, %v1009
    %v1205 = vadd.f32 %v1204, %v1015
    %v1206 = vadd.f32 %v1112, %v1205
    %v1207 = vld [vmem:[%s477] sm:$0xff]
    %v1208 = vsel %vm274, %v1176, 0
    %1210 = vmatpush.msra.mxu0 0.0
    %1211 = vmatpush.msra.mxu0 0.0
    %1212 = vmatpush.msra.mxu0 0.0
    %1213 = vmatpush.msra.mxu0 0.0
    %1214 = vmatpush.msra.mxu0 0.0
    %1215 = vmatpush.msra.mxu0 0.0
    %1216 = vmatpush.msra.mxu0 0.0
    %1217 = vmatpush.msra.mxu0 0.0
    %1218 = vmatpush.msra.mxu0 0.0
    %1219 = vmatpush.msra.mxu0 0.0
    %1220 = vmatpush.msra.mxu0 0.0
    %1221 = vmatpush.msra.mxu0 0.0
    %1222 = vmatpush.msra.mxu0 %v824
    %1223 = vmatpush.msra.mxu0 %v823
    %1224 = vmatpush.msra.mxu0 %v822
    %1225 = vmatpush.msra.mxu0 %v821
    %1226 = vmatmul.f32.gmra.mxu0 %v1208
    %v1227 = vpop.f32.mrf.mxu0
    %v1228 = vadd.f32 0.0, %v1227
    %1229 = vdwg.mxu0
    %v1230 = vadd.f32 %v1207, %v1228
    %v1231 = vxor.u32 %v1230, 2147483648
    %v1232 = vmul.f32 %v1231, 1.442695
    %v1233 = vpow.pop %v1232
    %v1234 = vadd.f32 %v1233, 1.0
    %v1235 = vrcp.pop %v1234
    %v1236 = vmul.f32 %v1234, %v1235
    %v1237 = vsub.f32 1.0, %v1236
    %v1238 = vmul.f32 %v1235, %v1237
    %v1239 = vadd.f32 %v1235, %v1238
    %vm1240 = vweird.f32 %v1234
    %vm1241 = vweird.f32 %v1235
    %vm1242 = vmor %vm1240, %vm1241
    %v1243 = vsel %vm1242, %v1235, %v1239
    %v1244 = vand.u32 2147483647, %v1234
    %vm1245 = vcmp.eq.f32.partialorder %v1244, 8.507059e+37
    %v1246 = vand.u32 %v1234, 2147483648
    %v1247 = vor.u32 1.1754944e-38, %v1246
    %v1248 = vsel %vm1245, %v1247, %v1243
    %v1249 = vmul.f32 1.0, %v1248
    %v1250 = vtanh.pop %v1230
    %v1251 = vmul.f32 %v1249, %v1167
    %1253 = vrot.lane.b32.xlu0 %v1250, 64
    %v1254 = vpop.permute.xlu0 %1253
    %v1256 = vmul.f32 %v1249, %v1254
    %1258 = vrot.lane.b32.xlu0 %v1256, 32
    %v1259 = vpop.permute.xlu0 %1258
    %v1261 = vadd.f32 %v1251, %v1259
    %v1262 = vtanh.pop %v1261
    %1264 = vrot.lane.b32.xlu0 %v1262, 64
    %v1265 = vpop.permute.xlu0 %1264
    %v1267 = vmul.f32 %v1249, %v1265
    %1269 = vrot.lane.b32.xlu0 %v1267, 32
    %v1270 = vpop.permute.xlu0 %1269
    %v1272 = vsel %vm274, %v1270, 0.0
    %1273 = vadd.xlane.f32.xlu0 %v1272
    %v1274 = vpop.xlane.xlu0 %1273
    %v1275 = vmul.f32 %v1274, %v982
    %v1276 = vsub.f32 %v1267, %v1275
    %v1277 = vmul.f32 %v1276, %v1276
    %1279 = vrot.lane.b32.xlu0 %v1277, 32
    %v1280 = vpop.permute.xlu0 %1279
    %v1282 = vsel %vm274, %v1280, 0.0
    %1283 = vadd.xlane.f32.xlu0 %v1282
    %v1284 = vpop.xlane.xlu0 %1283
    %v1285 = vmul.f32 %v1284, %v982
    %v1286 = vadd.f32 %v1285, 1e-05
    %v1287 = vrsqrt.pop %v1286
    %v1288 = vmul.f32 %v1287, %v1286
    %v1289 = vmul.f32 %v1288, %v1287
    %v1290 = vmul.f32 0.5, %v1289
    %v1291 = vsub.f32 1.5, %v1290
    %v1292 = vmul.f32 %v1287, %v1291
    %vm1293 = vweird.f32 %v1286
    %vm1294 = vweird.f32 %v1287
    %vm1295 = vmor %vm1293, %vm1294
    %v1296 = vsel %vm1295, %v1287, %v1292
    %v1297 = vmul.f32 %v1276, %v1296
    %v1298 = vmul.f32 %v1297, %v1009
    %v1299 = vadd.f32 %v1298, %v1015
    %v1300 = vadd.f32 %v1206, %v1299
    %v1301 = vld [vmem:[%s545] sm:$0xff]
    %v1302 = vsel %vm274, %v1270, 0
    %1304 = vmatpush.msra.mxu0 0.0
    %1305 = vmatpush.msra.mxu0 0.0
    %1306 = vmatpush.msra.mxu0 0.0
    %1307 = vmatpush.msra.mxu0 0.0
    %1308 = vmatpush.msra.mxu0 0.0
    %1309 = vmatpush.msra.mxu0 0.0
    %1310 = vmatpush.msra.mxu0 0.0
    %1311 = vmatpush.msra.mxu0 0.0
    %1312 = vmatpush.msra.mxu0 0.0
    %1313 = vmatpush.msra.mxu0 0.0
    %1314 = vmatpush.msra.mxu0 0.0
    %1315 = vmatpush.msra.mxu0 0.0
    %1316 = vmatpush.msra.mxu0 %v824
    %1317 = vmatpush.msra.mxu0 %v823
    %1318 = vmatpush.msra.mxu0 %v822
    %1319 = vmatpush.msra.mxu0 %v821
    %1320 = vmatmul.f32.gmra.mxu0 %v1302
    %v1321 = vpop.f32.mrf.mxu0
    %v1322 = vadd.f32 0.0, %v1321
    %1323 = vdwg.mxu0
    %v1324 = vadd.f32 %v1301, %v1322
    %v1325 = vxor.u32 %v1324, 2147483648
    %v1326 = vmul.f32 %v1325, 1.442695
    %v1327 = vpow.pop %v1326
    %v1328 = vadd.f32 %v1327, 1.0
    %v1329 = vrcp.pop %v1328
    %v1330 = vmul.f32 %v1328, %v1329
    %v1331 = vsub.f32 1.0, %v1330
    %v1332 = vmul.f32 %v1329, %v1331
    %v1333 = vadd.f32 %v1329, %v1332
    %vm1334 = vweird.f32 %v1328
    %vm1335 = vweird.f32 %v1329
    %vm1336 = vmor %vm1334, %vm1335
    %v1337 = vsel %vm1336, %v1329, %v1333
    %v1338 = vand.u32 2147483647, %v1328
    %vm1339 = vcmp.eq.f32.partialorder %v1338, 8.507059e+37
    %v1340 = vand.u32 %v1328, 2147483648
    %v1341 = vor.u32 1.1754944e-38, %v1340
    %v1342 = vsel %vm1339, %v1341, %v1337
    %v1343 = vmul.f32 1.0, %v1342
    %v1344 = vtanh.pop %v1324
    %v1345 = vmul.f32 %v1343, %v1261
    %1347 = vrot.lane.b32.xlu0 %v1344, 64
    %v1348 = vpop.permute.xlu0 %1347
    %v1350 = vmul.f32 %v1343, %v1348
    %1352 = vrot.lane.b32.xlu0 %v1350, 32
    %v1353 = vpop.permute.xlu0 %1352
    %v1355 = vadd.f32 %v1345, %v1353
    %v1356 = vtanh.pop %v1355
    %1358 = vrot.lane.b32.xlu0 %v1356, 64
    %v1359 = vpop.permute.xlu0 %1358
    %v1361 = vmul.f32 %v1343, %v1359
    %1363 = vrot.lane.b32.xlu0 %v1361, 32
    %v1364 = vpop.permute.xlu0 %1363
    %v1366 = vsel %vm274, %v1364, 0.0
    %1367 = vadd.xlane.f32.xlu0 %v1366
    %v1368 = vpop.xlane.xlu0 %1367
    %v1369 = vmul.f32 %v1368, %v982
    %v1370 = vsub.f32 %v1361, %v1369
    %v1371 = vmul.f32 %v1370, %v1370
    %1373 = vrot.lane.b32.xlu0 %v1371, 32
    %v1374 = vpop.permute.xlu0 %1373
    %v1376 = vsel %vm274, %v1374, 0.0
    %1377 = vadd.xlane.f32.xlu0 %v1376
    %v1378 = vpop.xlane.xlu0 %1377
    %v1379 = vmul.f32 %v1378, %v982
    %v1380 = vadd.f32 %v1379, 1e-05
    %v1381 = vrsqrt.pop %v1380
    %v1382 = vmul.f32 %v1381, %v1380
    %v1383 = vmul.f32 %v1382, %v1381
    %v1384 = vmul.f32 0.5, %v1383
    %v1385 = vsub.f32 1.5, %v1384
    %v1386 = vmul.f32 %v1381, %v1385
    %vm1387 = vweird.f32 %v1380
    %vm1388 = vweird.f32 %v1381
    %vm1389 = vmor %vm1387, %vm1388
    %v1390 = vsel %vm1389, %v1381, %v1386
    %v1391 = vmul.f32 %v1370, %v1390
    %v1392 = vmul.f32 %v1391, %v1009
    %v1393 = vadd.f32 %v1392, %v1015
    %v1394 = vadd.f32 %v1300, %v1393
    %v1395 = vld [vmem:[%s613] sm:$0xff]
    %v1396 = vsel %vm274, %v1364, 0
    %1398 = vmatpush.msra.mxu0 0.0
    %1399 = vmatpush.msra.mxu0 0.0
    %1400 = vmatpush.msra.mxu0 0.0
    %1401 = vmatpush.msra.mxu0 0.0
    %1402 = vmatpush.msra.mxu0 0.0
    %1403 = vmatpush.msra.mxu0 0.0
    %1404 = vmatpush.msra.mxu0 0.0
    %1405 = vmatpush.msra.mxu0 0.0
    %1406 = vmatpush.msra.mxu0 0.0
    %1407 = vmatpush.msra.mxu0 0.0
    %1408 = vmatpush.msra.mxu0 0.0
    %1409 = vmatpush.msra.mxu0 0.0
    %1410 = vmatpush.msra.mxu0 %v824
    %1411 = vmatpush.msra.mxu0 %v823
    %1412 = vmatpush.msra.mxu0 %v822
    %1413 = vmatpush.msra.mxu0 %v821
    %1414 = vmatmul.f32.gmra.mxu0 %v1396
    %v1415 = vpop.f32.mrf.mxu0
    %v1416 = vadd.f32 0.0, %v1415
    %1417 = vdwg.mxu0
    %v1418 = vadd.f32 %v1395, %v1416
    %v1419 = vxor.u32 %v1418, 2147483648
    %v1420 = vmul.f32 %v1419, 1.442695
    %v1421 = vpow.pop %v1420
    %v1422 = vadd.f32 %v1421, 1.0
    %v1423 = vrcp.pop %v1422
    %v1424 = vmul.f32 %v1422, %v1423
    %v1425 = vsub.f32 1.0, %v1424
    %v1426 = vmul.f32 %v1423, %v1425
    %v1427 = vadd.f32 %v1423, %v1426
    %vm1428 = vweird.f32 %v1422
    %vm1429 = vweird.f32 %v1423
    %vm1430 = vmor %vm1428, %vm1429
    %v1431 = vsel %vm1430, %v1423, %v1427
    %v1432 = vand.u32 2147483647, %v1422
    %vm1433 = vcmp.eq.f32.partialorder %v1432, 8.507059e+37
    %v1434 = vand.u32 %v1422, 2147483648
    %v1435 = vor.u32 1.1754944e-38, %v1434
    %v1436 = vsel %vm1433, %v1435, %v1431
    %v1437 = vmul.f32 1.0, %v1436
    %v1438 = vtanh.pop %v1418
    %v1439 = vmul.f32 %v1437, %v1355
    %1441 = vrot.lane.b32.xlu0 %v1438, 64
    %v1442 = vpop.permute.xlu0 %1441
    %v1444 = vmul.f32 %v1437, %v1442
    %1446 = vrot.lane.b32.xlu0 %v1444, 32
    %v1447 = vpop.permute.xlu0 %1446
    %v1449 = vadd.f32 %v1439, %v1447
    %v1450 = vtanh.pop %v1449
    %1452 = vrot.lane.b32.xlu0 %v1450, 64
    %v1453 = vpop.permute.xlu0 %1452
    %v1455 = vmul.f32 %v1437, %v1453
    %1457 = vrot.lane.b32.xlu0 %v1455, 32
    %v1458 = vpop.permute.xlu0 %1457
    %v1460 = vsel %vm274, %v1458, 0.0
    %1461 = vadd.xlane.f32.xlu0 %v1460
    %v1462 = vpop.xlane.xlu0 %1461
    %v1463 = vmul.f32 %v1462, %v982
    %v1464 = vsub.f32 %v1455, %v1463
    %v1465 = vmul.f32 %v1464, %v1464
    %1467 = vrot.lane.b32.xlu0 %v1465, 32
    %v1468 = vpop.permute.xlu0 %1467
    %v1470 = vsel %vm274, %v1468, 0.0
    %1471 = vadd.xlane.f32.xlu0 %v1470
    %v1472 = vpop.xlane.xlu0 %1471
    %v1473 = vmul.f32 %v1472, %v982
    %v1474 = vadd.f32 %v1473, 1e-05
    %v1475 = vrsqrt.pop %v1474
    %v1476 = vmul.f32 %v1475, %v1474
    %v1477 = vmul.f32 %v1476, %v1475
    %v1478 = vmul.f32 0.5, %v1477
    %v1479 = vsub.f32 1.5, %v1478
    %v1480 = vmul.f32 %v1475, %v1479
    %vm1481 = vweird.f32 %v1474
    %vm1482 = vweird.f32 %v1475
    %vm1483 = vmor %vm1481, %vm1482
    %v1484 = vsel %vm1483, %v1475, %v1480
    %v1485 = vmul.f32 %v1464, %v1484
    %v1486 = vmul.f32 %v1485, %v1009
    %v1487 = vadd.f32 %v1486, %v1015
    %v1488 = vadd.f32 %v1394, %v1487
    %v1489 = vld [vmem:[%s681] sm:$0xff]
    %v1490 = vsel %vm274, %v1458, 0
    %1492 = vmatpush.msra.mxu0 0.0
    %1493 = vmatpush.msra.mxu0 0.0
    %1494 = vmatpush.msra.mxu0 0.0
    %1495 = vmatpush.msra.mxu0 0.0
    %1496 = vmatpush.msra.mxu0 0.0
    %1497 = vmatpush.msra.mxu0 0.0
    %1498 = vmatpush.msra.mxu0 0.0
    %1499 = vmatpush.msra.mxu0 0.0
    %1500 = vmatpush.msra.mxu0 0.0
    %1501 = vmatpush.msra.mxu0 0.0
    %1502 = vmatpush.msra.mxu0 0.0
    %1503 = vmatpush.msra.mxu0 0.0
    %1504 = vmatpush.msra.mxu0 %v824
    %1505 = vmatpush.msra.mxu0 %v823
    %1506 = vmatpush.msra.mxu0 %v822
    %1507 = vmatpush.msra.mxu0 %v821
    %1508 = vmatmul.f32.gmra.mxu0 %v1490
    %v1509 = vpop.f32.mrf.mxu0
    %v1510 = vadd.f32 0.0, %v1509
    %1511 = vdwg.mxu0
    %v1512 = vadd.f32 %v1489, %v1510
    %v1513 = vxor.u32 %v1512, 2147483648
    %v1514 = vmul.f32 %v1513, 1.442695
    %v1515 = vpow.pop %v1514
    %v1516 = vadd.f32 %v1515, 1.0
    %v1517 = vrcp.pop %v1516
    %v1518 = vmul.f32 %v1516, %v1517
    %v1519 = vsub.f32 1.0, %v1518
    %v1520 = vmul.f32 %v1517, %v1519
    %v1521 = vadd.f32 %v1517, %v1520
    %vm1522 = vweird.f32 %v1516
    %vm1523 = vweird.f32 %v1517
    %vm1524 = vmor %vm1522, %vm1523
    %v1525 = vsel %vm1524, %v1517, %v1521
    %v1526 = vand.u32 2147483647, %v1516
    %vm1527 = vcmp.eq.f32.partialorder %v1526, 8.507059e+37
    %v1528 = vand.u32 %v1516, 2147483648
    %v1529 = vor.u32 1.1754944e-38, %v1528
    %v1530 = vsel %vm1527, %v1529, %v1525
    %v1531 = vmul.f32 1.0, %v1530
    %v1532 = vtanh.pop %v1512
    %v1533 = vmul.f32 %v1531, %v1449
    %1535 = vrot.lane.b32.xlu0 %v1532, 64
    %v1536 = vpop.permute.xlu0 %1535
    %v1538 = vmul.f32 %v1531, %v1536
    %1540 = vrot.lane.b32.xlu0 %v1538, 32
    %v1541 = vpop.permute.xlu0 %1540
    %v1543 = vadd.f32 %v1533, %v1541
    %v1544 = vtanh.pop %v1543
    %1546 = vrot.lane.b32.xlu0 %v1544, 64
    %v1547 = vpop.permute.xlu0 %1546
    %v1549 = vmul.f32 %v1531, %v1547
    %1551 = vrot.lane.b32.xlu0 %v1549, 32
    %v1552 = vpop.permute.xlu0 %1551
    %v1554 = vsel %vm274, %v1552, 0.0
    %1555 = vadd.xlane.f32.xlu0 %v1554
    %v1556 = vpop.xlane.xlu0 %1555
    %v1557 = vmul.f32 %v1556, %v982
    %v1558 = vsub.f32 %v1549, %v1557
    %v1559 = vmul.f32 %v1558, %v1558
    %1561 = vrot.lane.b32.xlu0 %v1559, 32
    %v1562 = vpop.permute.xlu0 %1561
    %v1564 = vsel %vm274, %v1562, 0.0
    %1565 = vadd.xlane.f32.xlu0 %v1564
    %v1566 = vpop.xlane.xlu0 %1565
    %v1567 = vmul.f32 %v1566, %v982
    %v1568 = vadd.f32 %v1567, 1e-05
    %v1569 = vrsqrt.pop %v1568
    %v1570 = vmul.f32 %v1569, %v1568
    %v1571 = vmul.f32 %v1570, %v1569
    %v1572 = vmul.f32 0.5, %v1571
    %v1573 = vsub.f32 1.5, %v1572
    %v1574 = vmul.f32 %v1569, %v1573
    %vm1575 = vweird.f32 %v1568
    %vm1576 = vweird.f32 %v1569
    %vm1577 = vmor %vm1575, %vm1576
    %v1578 = vsel %vm1577, %v1569, %v1574
    %v1579 = vmul.f32 %v1558, %v1578
    %v1580 = vmul.f32 %v1579, %v1009
    %v1581 = vadd.f32 %v1580, %v1015
    %v1582 = vadd.f32 %v1488, %v1581
    %v1583 = vld [vmem:[%s749] sm:$0xff]
    %v1584 = vsel %vm274, %v1552, 0
    %1586 = vmatpush.msra.mxu0 0.0
    %1587 = vmatpush.msra.mxu0 0.0
    %1588 = vmatpush.msra.mxu0 0.0
    %1589 = vmatpush.msra.mxu0 0.0
    %1590 = vmatpush.msra.mxu0 0.0
    %1591 = vmatpush.msra.mxu0 0.0
    %1592 = vmatpush.msra.mxu0 0.0
    %1593 = vmatpush.msra.mxu0 0.0
    %1594 = vmatpush.msra.mxu0 0.0
    %1595 = vmatpush.msra.mxu0 0.0
    %1596 = vmatpush.msra.mxu0 0.0
    %1597 = vmatpush.msra.mxu0 0.0
    %1598 = vmatpush.msra.mxu0 %v824
    %1599 = vmatpush.msra.mxu0 %v823
    %1600 = vmatpush.msra.mxu0 %v822
    %1601 = vmatpush.msra.mxu0 %v821
    %1602 = vmatmul.f32.gmra.mxu0 %v1584
    %v1603 = vpop.f32.mrf.mxu0
    %v1604 = vadd.f32 0.0, %v1603
    %1605 = vdwg.mxu0
    %v1606 = vadd.f32 %v1583, %v1604
    %v1607 = vxor.u32 %v1606, 2147483648
    %v1608 = vmul.f32 %v1607, 1.442695
    %v1609 = vpow.pop %v1608
    %v1610 = vadd.f32 %v1609, 1.0
    %v1611 = vrcp.pop %v1610
    %v1612 = vmul.f32 %v1610, %v1611
    %v1613 = vsub.f32 1.0, %v1612
    %v1614 = vmul.f32 %v1611, %v1613
    %v1615 = vadd.f32 %v1611, %v1614
    %vm1616 = vweird.f32 %v1610
    %vm1617 = vweird.f32 %v1611
    %vm1618 = vmor %vm1616, %vm1617
    %v1619 = vsel %vm1618, %v1611, %v1615
    %v1620 = vand.u32 2147483647, %v1610
    %vm1621 = vcmp.eq.f32.partialorder %v1620, 8.507059e+37
    %v1622 = vand.u32 %v1610, 2147483648
    %v1623 = vor.u32 1.1754944e-38, %v1622
    %v1624 = vsel %vm1621, %v1623, %v1619
    %v1625 = vmul.f32 1.0, %v1624
    %v1626 = vtanh.pop %v1606
    %v1627 = vmul.f32 %v1625, %v1543
    %1629 = vrot.lane.b32.xlu0 %v1626, 64
    %v1630 = vpop.permute.xlu0 %1629
    %v1632 = vmul.f32 %v1625, %v1630
    %1634 = vrot.lane.b32.xlu0 %v1632, 32
    %v1635 = vpop.permute.xlu0 %1634
    %v1637 = vadd.f32 %v1627, %v1635
    %v1638 = vtanh.pop %v1637
    %1640 = vrot.lane.b32.xlu0 %v1638, 64
    %v1641 = vpop.permute.xlu0 %1640
    %v1643 = vmul.f32 %v1625, %v1641
    %1645 = vrot.lane.b32.xlu0 %v1643, 32
    %v1646 = vpop.permute.xlu0 %1645
    %v1648 = vsel %vm274, %v1646, 0.0
    %1649 = vadd.xlane.f32.xlu0 %v1648
    %v1650 = vpop.xlane.xlu0 %1649
    %v1651 = vmul.f32 %v1650, %v982
    %v1652 = vsub.f32 %v1643, %v1651
    %v1653 = vmul.f32 %v1652, %v1652
    %1655 = vrot.lane.b32.xlu0 %v1653, 32
    %v1656 = vpop.permute.xlu0 %1655
    %v1658 = vsel %vm274, %v1656, 0.0
    %1659 = vadd.xlane.f32.xlu0 %v1658
    %v1660 = vpop.xlane.xlu0 %1659
    %v1661 = vmul.f32 %v1660, %v982
    %v1662 = vadd.f32 %v1661, 1e-05
    %v1663 = vrsqrt.pop %v1662
    %v1664 = vmul.f32 %v1663, %v1662
    %v1665 = vmul.f32 %v1664, %v1663
    %v1666 = vmul.f32 0.5, %v1665
    %v1667 = vsub.f32 1.5, %v1666
    %v1668 = vmul.f32 %v1663, %v1667
    %vm1669 = vweird.f32 %v1662
    %vm1670 = vweird.f32 %v1663
    %vm1671 = vmor %vm1669, %vm1670
    %v1672 = vsel %vm1671, %v1663, %v1668
    %v1673 = vmul.f32 %v1652, %v1672
    %v1674 = vmul.f32 %v1673, %v1009
    %v1675 = vadd.f32 %v1674, %v1015
    %v1676 = vadd.f32 %v1582, %v1675
    %v1677 = vmul.f32 %v1676, 0.125
    %v1678 = vld [vmem:[%s11] sm:$0xff]
    %v1679 = vld [vmem:[%s11 + $0x8] sm:$0xff]
    %v1680 = vld [vmem:[%s11 + $0x10] sm:$0xff]
    %v1681 = vld [vmem:[%s11 + $0x18] sm:$0xff]
    %v1682 = vld [vmem:[%s12] sm:$0x1]
    %v1684 = vperm.slane %v1682, 0
    %1687 = vrot.lane.b32.xlu0 %v1677, 32
    %v1688 = vpop.permute.xlu0 %1687
    %v1689 = vsel %vm274, %v1688, 0
    %1691 = vmatpush.msra.mxu0 0.0
    %1692 = vmatpush.msra.mxu0 0.0
    %1693 = vmatpush.msra.mxu0 0.0
    %1694 = vmatpush.msra.mxu0 0.0
    %1695 = vmatpush.msra.mxu0 0.0
    %1696 = vmatpush.msra.mxu0 0.0
    %1697 = vmatpush.msra.mxu0 0.0
    %1698 = vmatpush.msra.mxu0 0.0
    %1699 = vmatpush.msra.mxu0 0.0
    %1700 = vmatpush.msra.mxu0 0.0
    %1701 = vmatpush.msra.mxu0 0.0
    %1702 = vmatpush.msra.mxu0 0.0
    %1703 = vmatpush.msra.mxu0 %v1681
    %1704 = vmatpush.msra.mxu0 %v1680
    %1705 = vmatpush.msra.mxu0 %v1679
    %1706 = vmatpush.msra.mxu0 %v1678
    %1707 = vmatmul.f32.gmra.mxu0 %v1689
    %v1708 = vpop.f32.mrf.mxu0
    %v1709 = vadd.f32 %v1684, %v1708
    %1710 = vdwg.mxu0
    %1711 = vst.msk [vmem:[#allocation12] sm:$0xff] %vm122, %v1709
    // Predicated region
    $region70: #{tpu_custom_call.1} parent=1 // pred_check
      _
    $region71: #{tpu_custom_call.1} parent=1 // pred_check_branch
      %1713 = sbr.rel (0) target = $region73
    $region72: #{tpu_custom_call.1} parent=1 // pred_region
      %1715 = vsyncadd [#allocation6], 0
      %s1717 = sshll.u32 [#allocation12], 4
      %s1718 = int_to_ptr.vmem [resolvable:$true] %s1717
      %s1719 = sshll.u32 %s13, 4
      %s1720 = int_to_ptr.hbm [resolvable:$true] %s1719
      %1722 = dma.vmem_to_hbm [thread:$0]  %s1718, 128, %s1720, [#allocation6]
    $region73: #{tpu_custom_call.1} parent=1 // pred_fallthru
      _
    // Predicated region
    $region74: #{tpu_custom_call.1} parent=1 // pred_check
      _
    $region75: #{tpu_custom_call.1} parent=1 // pred_check_branch
      %1724 = sbr.rel (0) target = $region77
    $region76: #{tpu_custom_call.1} parent=1 // pred_region
      %1726 = dma.done [#allocation6], 128
    $region77: #{tpu_custom_call.1} parent=1 // pred_fallthru
      _
    %1727 = vsyncpa [#allocation5], 1
    %1728 = vsyncpa [#allocation8], 1
    %1729 = vsyncpa [#allocation11], 1
    %1730 = vsyncpa [#allocation6], 1

</llo_original>
